<compile_context>
chip_gen: v7x
topology: tpu7x:2x2x1
jax: 0.10.0
libtpu: 0.0.40
codegen_flags: <defaults>
</compile_context>

<pallas_src>
import math
from functools import partial

import numpy as np
import jax
import jax.numpy as jnp
from jax.experimental import pallas as pl
from jax.experimental.pallas import tpu as pltpu


# ----------------------------------------------------------------------------
# tanh-form GELU (runs on the EUP).  Deviates from torch's exact erf GELU by
# <~3e-4 abs; acceptable at fp32 tolerances (documented trade-off).
# ----------------------------------------------------------------------------
def _gelu(x):
    c = math.sqrt(2.0 / math.pi)
    return 0.5 * x * (1.0 + jnp.tanh(c * (x + 0.044715 * x * x * x)))


# ----------------------------------------------------------------------------
# Kernel: one batch *block* of TB elements per grid step.
# ----------------------------------------------------------------------------
def _spectral_attn_kernel(num_heads, freq_bins,
                          x_ref, gamma_ref, beta_ref,
                          w1_ref, b1_ref, w2_ref, b2_ref,
                          basef_ref, baseb_ref, emask_ref,
                          cfwd_ref, cinv_ref, gate_ref, o_ref):
    TB, N, D = x_ref.shape
    H, F = num_heads, freq_bins
    HF = H * F

    # Batch-independent values hoisted out of the per-batch loop.
    alpha = jax.nn.sigmoid(gate_ref[...])                                # (1, 1)
    even_mask = (jax.lax.broadcasted_iota(jnp.int32, (N, D), 0) & 1) == 0

    @pl.loop(0, TB)
    def _per_batch(b):
        xb = x_ref[b]                                                    # (N, D)

        # --- pre_norm: LayerNorm over embed dim (eps=1e-5, biased variance) ---
        mu = jnp.mean(xb, axis=-1, keepdims=True)
        xc = xb - mu
        var = jnp.mean(xc * xc, axis=-1, keepdims=True)
        xn = xc * jax.lax.rsqrt(var + 1e-5) * gamma_ref[...] + beta_ref[...]

        # --- adaptive MLP on mean-pooled context ---
        ctx = jnp.mean(xn, axis=0, keepdims=True)                        # (1, D)
        h1 = _gelu(jnp.dot(ctx, w1_ref[...],
                           preferred_element_type=jnp.float32) + b1_ref[...])
        adapt = (jnp.dot(h1, w2_ref[...],
                         preferred_element_type=jnp.float32) + b2_ref[...])   # (1, 2HF)
        # adapt layout: [:, :HF] = scales, [:, HF:] = biases (head-major, freq-minor)

        # --- forward real-DFT, all heads fused, merged [cos | -sin] matmul ---
        # reim[d, k] = sum_n xn[n, d] * cfwd[n, k]                       -> (D, 2F)
        reim = jax.lax.dot_general(xn, cfwd_ref[...], (((0,), (0,)), ((), ())),
                                   preferred_element_type=jnp.float32)
        re = reim[:, :F]                                                 # (D, F)
        im = reim[:, F:]                                                 # (D, F)

        # --- expand per-head adaptive scale/bias to per-channel (D, F) ---
        scale_acc = jnp.zeros((D, F), jnp.float32)
        bias_acc = jnp.zeros((D, F), jnp.float32)
        for h in range(H):                       # static, tiny; temporaries are (D,F)
            m = emask_ref[:, h:h + 1]            # (D, 1) one-hot head membership
            scale_acc = scale_acc + m * adapt[:, h * F:(h + 1) * F]
            bias_acc = bias_acc + m * adapt[:, HF + h * F:HF + (h + 1) * F]
        eff_filter = basef_ref[...] * (1.0 + scale_acc)                  # (D, F)
        eff_bias = baseb_ref[...] + bias_acc                             # (D, F)

        # --- modulation + complex GELU (phase-preserving magnitude rescale) ---
        re_m = re * eff_filter + eff_bias        # real bias -> real part only
        im_m = im * eff_filter
        mag = jnp.sqrt(re_m * re_m + im_m * im_m)
        s = _gelu(mag) * pl.reciprocal(mag + 1e-6, approx=True)
        spec = jnp.concatenate([re_m * s, im_m * s], axis=1)             # (D, 2F)

        # --- inverse real-DFT (merged), result already lane-dense (N, D) ---
        # x_fft[n, d] = sum_k cinv[n, k] * spec[d, k]
        x_fft = jax.lax.dot_general(cinv_ref[...], spec, (((1,), (1,)), ((), ())),
                                    preferred_element_type=jnp.float32)  # (N, D)

        # --- local branch: single-level Haar wavelet (all heads at once) ---
        x_dn = pltpu.roll(xn, shift=1, axis=0)        # row n -> xn[n-1] (XLU rotate)
        x_up = pltpu.roll(xn, shift=N - 1, axis=0)    # row n -> xn[n+1]
        pair_even = jnp.where(even_mask, xn, x_dn)    # even member of each pair
        pair_odd = jnp.where(even_mask, x_up, xn)     # odd member of each pair
        approx = 0.5 * (pair_even + pair_odd)
        detail = 0.5 * (pair_even - pair_odd)
        ga = _gelu(approx)
        gd = _gelu(detail)
        x_wav = ga + jnp.where(even_mask, gd, -gd)    # (N, D)

        # --- gated combine + residual; single full-width store ---
        comb = alpha * x_wav + (1.0 - alpha) * x_fft
        # TODO(synk): dropout treated as eval-mode identity.
        o_ref[b] = xb + comb


# ----------------------------------------------------------------------------
# Host-side helpers: DFT matrices, block sizing, VMEM budget, parameters.
# ----------------------------------------------------------------------------
def _dft_matrices(seq_len):
    """Merged forward [cos|-sin]/sqrt(N) and weighted inverse matrices (ortho)."""
    N = seq_len
    F = N // 2 + 1
    n = np.arange(N, dtype=np.float64)[:, None]
    f = np.arange(F, dtype=np.float64)[None, :]
    ang = 2.0 * np.pi * n * f / N                              # (N, F)
    inv_sqrt_n = 1.0 / np.sqrt(N)
    cr = np.cos(ang) * inv_sqrt_n
    ci = -np.sin(ang) * inv_sqrt_n
    w = np.full((1, F), 2.0)
    w[0, 0] = 1.0
    if N % 2 == 0:
        w[0, -1] = 1.0                                         # Nyquist bin weight
    cfwd = np.concatenate([cr, ci], axis=1)                    # (N, 2F)  forward rfft
    cinv = np.concatenate([w * cr, w * ci], axis=1)            # (N, 2F)  inverse irfft
    return jnp.asarray(cfwd, jnp.float32), jnp.asarray(cinv, jnp.float32)


def _pick_batch_block(B, N, D, max_bytes=1 << 20):
    """Largest divisor of B whose x-block fits ~1 MiB, keeping >=2 grid steps
    when possible so both v7x TensorCores get work."""
    divs = [d for d in range(1, B + 1) if B % d == 0]
    ok = [d for d in divs if d * N * D * 4 <= max_bytes] or [1]
    two_core = [d for d in ok if B // d >= 2]
    return max(two_core) if two_core else max(ok)


def _vmem_limit_bytes(TB, N, D, H, F):
    f32 = 4
    blk = TB * N * D                                   # one x / out block
    weights = (2 * D + D * D + D + D * 2 * H * F + 2 * H * F
               + 2 * D * F + D * H + 2 * N * 2 * F + 1)
    total = f32 * (2 * 2 * blk + 2 * weights)          # double-buffered blocks + weights
    total = int(total * 1.5) + (8 << 20)               # headroom for in-kernel temporaries
    return max(32 << 20, min(total, 64 << 20))         # stay within v7x physical VMEM


def make_params(key, embed_dim, seq_len, num_heads):
    """Parameters in torch-equivalent layout (Linear weights stored as (in, out))."""
    D = embed_dim
    F = seq_len // 2 + 1
    out2 = num_heads * F * 2
    k1, k2, k3, k4 = jax.random.split(key, 4)
    lim = 1.0 / math.sqrt(D)
    return dict(
        gamma=jnp.ones((1, D), jnp.float32),           # LayerNorm weight
        beta=jnp.zeros((1, D), jnp.float32),           # LayerNorm bias
        w1=jax.random.uniform(k1, (D, D), jnp.float32, -lim, lim),
        b1=jax.random.uniform(k2, (1, D), jnp.float32, -lim, lim),
        w2=jax.random.uniform(k3, (D, out2), jnp.float32, -lim, lim),  # torch col order (h,f,{s,b})
        b2=jax.random.uniform(k4, (1, out2), jnp.float32, -lim, lim),
        base_filter=jnp.ones((num_heads, F), jnp.float32),
        base_bias=jnp.full((num_heads, F), -0.1, jnp.float32),
        gate=jnp.zeros((1, 1), jnp.float32),           # gate_param (combine_mode='gate')
    )


def multi_head_spectral_attention(x, params, *, num_heads, batch_block=None):
    B, N, D = x.shape
    assert D % num_heads == 0
    assert N % 2 == 0  # TODO(synk): odd-seq_len truncate+pad wavelet path not implemented
    Dh = D // num_heads
    F = N // 2 + 1
    hf2 = 2 * num_heads * F
    TB = batch_block or _pick_batch_block(B, N, D)
    if B % TB != 0:
        raise ValueError("batch_block must divide batch size")

    cfwd, cinv = _dft_matrices(N)

    # Host-side layout transforms: per-head params expanded to per-channel rows
    # (head-major channel order, matching x_norm.view(B,N,H,Dh)).
    basef_exp = jnp.repeat(params["base_filter"], Dh, axis=0)            # (D, F)
    baseb_exp = jnp.repeat(params["base_bias"], Dh, axis=0)              # (D, F)
    emask = jnp.repeat(jnp.eye(num_heads, dtype=jnp.float32), Dh, axis=0)  # (D, H)
    # Reorder MLP output columns from torch layout (h, f, {scale,bias}) to
    # ({scale,bias}, h, f) so the kernel can slice scales/biases contiguously.
    w2 = params["w2"].reshape(D, num_heads, F, 2).transpose(0, 3, 1, 2).reshape(D, hf2)
    b2 = params["b2"].reshape(1, num_heads, F, 2).transpose(0, 3, 1, 2).reshape(1, hf2)

    kernel = partial(_spectral_attn_kernel, num_heads, F)

    def inv(shape):
        nd = len(shape)
        return pl.BlockSpec(shape, lambda g: (0,) * nd)   # grid-invariant: fetched once

    in_specs = [
        pl.BlockSpec((TB, N, D), lambda g: (g, 0, 0)),     # x, batch-blocked
        inv((1, D)), inv((1, D)),                          # gamma, beta
        inv((D, D)), inv((1, D)),                          # w1, b1
        inv((D, hf2)), inv((1, hf2)),                      # w2, b2 (reordered)
        inv((D, F)), inv((D, F)),                          # base filter / bias (expanded)
        inv((D, num_heads)),                               # head one-hot expansion mask
        inv((N, 2 * F)), inv((N, 2 * F)),                  # merged fwd / inv DFT matrices
        inv((1, 1)),                                       # gate param
    ]
    out_spec = pl.BlockSpec((TB, N, D), lambda g: (g, 0, 0))

    return pl.pallas_call(
        kernel,
        out_shape=jax.ShapeDtypeStruct((B, N, D), jnp.float32),
        grid=(B // TB,),
        in_specs=in_specs,
        out_specs=out_spec,
        compiler_params=pltpu.CompilerParams(
            dimension_semantics=("parallel",),
            vmem_limit_bytes=_vmem_limit_bytes(TB, N, D, num_heads, F)),
    )(x, params["gamma"], params["beta"], params["w1"], params["b1"],
      w2, b2, basef_exp, baseb_exp, emask, cfwd, cinv, params["gate"])


# ----------------------------------------------------------------------------
# Pure-JAX reference (same GELU form) for a loose numerical self-check.
# ----------------------------------------------------------------------------
def _reference(x, params, num_heads):
    B, N, D = x.shape
    Dh = D // num_heads
    F = N // 2 + 1
    mu = jnp.mean(x, axis=-1, keepdims=True)
    var = jnp.mean((x - mu) ** 2, axis=-1, keepdims=True)
    xn = (x - mu) / jnp.sqrt(var + 1e-5) * params["gamma"][0] + params["beta"][0]
    xh = xn.reshape(B, N, num_heads, Dh).transpose(0, 2, 1, 3)           # (B,H,N,Dh)
    Ffft = jnp.fft.rfft(xh, axis=2, norm="ortho")
    ctx = jnp.mean(xn, axis=1)
    h1 = jax.nn.gelu(ctx @ params["w1"] + params["b1"][0], approximate=True)
    adapt = (h1 @ params["w2"] + params["b2"][0]).reshape(B, num_heads, F, 2)
    eff_f = params["base_filter"][None, :, :, None] * (1.0 + adapt[..., 0:1])
    eff_b = params["base_bias"][None, :, :, None] + adapt[..., 1:2]
    Fm = Ffft * eff_f + eff_b
    mag = jnp.abs(Fm)
    Fnl = Fm * (jax.nn.gelu(mag, approximate=True) / (mag + 1e-6))
    x_fft = jnp.fft.irfft(Fnl, n=N, axis=2, norm="ortho")
    xe, xo = xh[:, :, 0::2, :], xh[:, :, 1::2, :]
    ap, de = 0.5 * (xe + xo), 0.5 * (xe - xo)
    ga, gd = jax.nn.gelu(ap, approximate=True), jax.nn.gelu(de, approximate=True)
    wav = jnp.stack([ga + gd, ga - gd], axis=3).reshape(B, num_heads, N, Dh)
    alpha = jax.nn.sigmoid(params["gate"][0, 0])
    comb = alpha * wav + (1.0 - alpha) * x_fft
    return x + comb.transpose(0, 2, 1, 3).reshape(B, N, D)


if __name__ == "__main__":
    B, seq_len, embed_dim, num_heads = 4, 8, 32, 4
    key = jax.random.PRNGKey(0)
    kx, kp = jax.random.split(key)
    x = jax.random.normal(kx, (B, seq_len, embed_dim), jnp.float32)
    params = make_params(kp, embed_dim, seq_len, num_heads)

    out = multi_head_spectral_attention(x, params, num_heads=num_heads)
    jax.block_until_ready(out)
    assert out.shape == (B, seq_len, embed_dim) and out.dtype == jnp.float32
    assert bool(jnp.all(jnp.isfinite(out)))

    ref = _reference(x, params, num_heads)
    # Loose tolerance: approx reciprocal + matmul-DFT vs jnp.fft introduce ~1e-3 error.
    assert bool(jnp.allclose(out, ref, rtol=5e-2, atol=5e-2)), \
        float(jnp.max(jnp.abs(out - ref)))
    print("KERNEL_OK")
</pallas_src>

<mosaic_0001>
module attributes {stable_mosaic.version = 11 : i64} {
  func.func @_spectral_attn_kernel(%arg0: i32, %arg1: memref<2x8x32xf32, #tpu.memory_space<vmem>>, %arg2: memref<1x32xf32, #tpu.memory_space<vmem>>, %arg3: memref<1x32xf32, #tpu.memory_space<vmem>>, %arg4: memref<32x32xf32, #tpu.memory_space<vmem>>, %arg5: memref<1x32xf32, #tpu.memory_space<vmem>>, %arg6: memref<32x40xf32, #tpu.memory_space<vmem>>, %arg7: memref<1x40xf32, #tpu.memory_space<vmem>>, %arg8: memref<32x5xf32, #tpu.memory_space<vmem>>, %arg9: memref<32x5xf32, #tpu.memory_space<vmem>>, %arg10: memref<32x4xf32, #tpu.memory_space<vmem>>, %arg11: memref<8x10xf32, #tpu.memory_space<vmem>>, %arg12: memref<8x10xf32, #tpu.memory_space<vmem>>, %arg13: memref<1x1xf32, #tpu.memory_space<vmem>>, %arg14: memref<2x8x32xf32, #tpu.memory_space<vmem>>) attributes {dimension_semantics = [#tpu.dimension_semantics<parallel>], iteration_bounds = array<i64: 2>, scalar_prefetch = 0 : i64, scratch_operands = 0 : i64, tpu.core_type = #tpu.core_type<tc>, window_params = [{transform_indices = @transform_0, window_bounds = array<i64: 2, 8, 32>}, {pipeline_mode = #tpu.pipeline_mode<synchronous>, transform_indices = @transform_1, window_bounds = array<i64: 1, 32>}, {pipeline_mode = #tpu.pipeline_mode<synchronous>, transform_indices = @transform_2, window_bounds = array<i64: 1, 32>}, {pipeline_mode = #tpu.pipeline_mode<synchronous>, transform_indices = @transform_3, window_bounds = array<i64: 32, 32>}, {pipeline_mode = #tpu.pipeline_mode<synchronous>, transform_indices = @transform_4, window_bounds = array<i64: 1, 32>}, {pipeline_mode = #tpu.pipeline_mode<synchronous>, transform_indices = @transform_5, window_bounds = array<i64: 32, 40>}, {pipeline_mode = #tpu.pipeline_mode<synchronous>, transform_indices = @transform_6, window_bounds = array<i64: 1, 40>}, {pipeline_mode = #tpu.pipeline_mode<synchronous>, transform_indices = @transform_7, window_bounds = array<i64: 32, 5>}, {pipeline_mode = #tpu.pipeline_mode<synchronous>, transform_indices = @transform_8, window_bounds = array<i64: 32, 5>}, {pipeline_mode = #tpu.pipeline_mode<synchronous>, transform_indices = @transform_9, window_bounds = array<i64: 32, 4>}, {pipeline_mode = #tpu.pipeline_mode<synchronous>, transform_indices = @transform_10, window_bounds = array<i64: 8, 10>}, {pipeline_mode = #tpu.pipeline_mode<synchronous>, transform_indices = @transform_11, window_bounds = array<i64: 8, 10>}, {pipeline_mode = #tpu.pipeline_mode<synchronous>, transform_indices = @transform_12, window_bounds = array<i64: 1, 1>}, {transform_indices = @transform_13, window_bounds = array<i64: 2, 8, 32>}]} {
    %c0 = arith.constant 0 : index
    %c0_0 = arith.constant 0 : index
    %0 = vector.load %arg13[%c0, %c0_0] : memref<1x1xf32, #tpu.memory_space<vmem>>, vector<1x1xf32>
    %1 = arith.negf %0 : vector<1x1xf32>
    %2 = math.exp %1 : vector<1x1xf32>
    %cst = arith.constant 1.000000e+00 : f32
    %3 = vector.broadcast %cst : f32 to vector<1x1xf32>
    %4 = arith.addf %3, %2 : vector<1x1xf32>
    %5 = arith.divf %3, %4 : vector<1x1xf32>
    %6 = tpu.iota {dimensions = array<i32: 0>} : vector<8x32xi32>
    %c1_i32 = arith.constant 1 : i32
    %7 = vector.broadcast %c1_i32 : i32 to vector<8x32xi32>
    %8 = arith.andi %6, %7 : vector<8x32xi32>
    %c0_i32 = arith.constant 0 : i32
    %9 = vector.broadcast %c0_i32 : i32 to vector<8x32xi32>
    %10 = arith.cmpi eq, %8, %9 : vector<8x32xi32>
    %c0_i32_1 = arith.constant 0 : i32
    %c2_i32 = arith.constant 2 : i32
    %11 = arith.addi %c0_i32_1, %c2_i32 : i32
    %c1_i32_2 = arith.constant 1 : i32
    scf.for %arg15 = %c0_i32_1 to %11 step %c1_i32_2  : i32 {
      %c1_i32_4 = arith.constant 1 : i32
      %12 = arith.muli %arg15, %c1_i32_4 : i32
      %c0_i32_5 = arith.constant 0 : i32
      %13 = arith.addi %c0_i32_5, %12 : i32
      %14 = arith.index_cast %13 : i32 to index
      %c0_6 = arith.constant 0 : index
      %c0_7 = arith.constant 0 : index
      %15 = vector.load %arg1[%14, %c0_6, %c0_7] : memref<2x8x32xf32, #tpu.memory_space<vmem>>, vector<1x8x32xf32>
      %16 = vector.shape_cast %15 : vector<1x8x32xf32> to vector<8x32xf32>
      %cst_8 = arith.constant dense<0.000000e+00> : vector<8xf32>
      %17 = vector.multi_reduction <add>, %16, %cst_8 [1] : vector<8x32xf32> to vector<8xf32>
      %18 = vector.shape_cast %17 : vector<8xf32> to vector<8x1xf32>
      %cst_9 = arith.constant 3.200000e+01 : f32
      %19 = vector.broadcast %cst_9 : f32 to vector<8x1xf32>
      %20 = arith.divf %18, %19 : vector<8x1xf32>
      %21 = vector.broadcast %20 : vector<8x1xf32> to vector<8x32xf32>
      %22 = arith.subf %16, %21 : vector<8x32xf32>
      %23 = arith.mulf %22, %22 : vector<8x32xf32>
      %cst_10 = arith.constant dense<0.000000e+00> : vector<8xf32>
      %24 = vector.multi_reduction <add>, %23, %cst_10 [1] : vector<8x32xf32> to vector<8xf32>
      %25 = vector.shape_cast %24 : vector<8xf32> to vector<8x1xf32>
      %cst_11 = arith.constant 3.200000e+01 : f32
      %26 = vector.broadcast %cst_11 : f32 to vector<8x1xf32>
      %27 = arith.divf %25, %26 : vector<8x1xf32>
      %cst_12 = arith.constant 9.99999974E-6 : f32
      %28 = vector.broadcast %cst_12 : f32 to vector<8x1xf32>
      %29 = arith.addf %27, %28 : vector<8x1xf32>
      %30 = math.rsqrt %29 : vector<8x1xf32>
      %31 = vector.broadcast %30 : vector<8x1xf32> to vector<8x32xf32>
      %32 = arith.mulf %22, %31 : vector<8x32xf32>
      %c0_13 = arith.constant 0 : index
      %c0_14 = arith.constant 0 : index
      %33 = vector.load %arg2[%c0_13, %c0_14] : memref<1x32xf32, #tpu.memory_space<vmem>>, vector<1x32xf32>
      %34 = vector.broadcast %33 : vector<1x32xf32> to vector<8x32xf32>
      %35 = arith.mulf %32, %34 : vector<8x32xf32>
      %c0_15 = arith.constant 0 : index
      %c0_16 = arith.constant 0 : index
      %36 = vector.load %arg3[%c0_15, %c0_16] : memref<1x32xf32, #tpu.memory_space<vmem>>, vector<1x32xf32>
      %37 = vector.broadcast %36 : vector<1x32xf32> to vector<8x32xf32>
      %38 = arith.addf %35, %37 : vector<8x32xf32>
      %cst_17 = arith.constant dense<0.000000e+00> : vector<32xf32>
      %39 = vector.multi_reduction <add>, %38, %cst_17 [0] : vector<8x32xf32> to vector<32xf32>
      %40 = vector.shape_cast %39 : vector<32xf32> to vector<1x32xf32>
      %cst_18 = arith.constant 8.000000e+00 : f32
      %41 = vector.broadcast %cst_18 : f32 to vector<1x32xf32>
      %42 = arith.divf %40, %41 : vector<1x32xf32>
      %c0_19 = arith.constant 0 : index
      %c0_20 = arith.constant 0 : index
      %43 = vector.load %arg4[%c0_19, %c0_20] : memref<32x32xf32, #tpu.memory_space<vmem>>, vector<32x32xf32>
      %cst_21 = arith.constant dense<0.000000e+00> : vector<1x32xf32>
      %44 = tpu.matmul %42, %43, %cst_21 {dimension_numbers = #tpu.dot_dimension_numbers<[1], [0], [0], [1], [0, 0, 1, 1], [], []>} : vector<1x32xf32>, vector<32x32xf32>, vector<1x32xf32> -> vector<1x32xf32>
      %c0_22 = arith.constant 0 : index
      %c0_23 = arith.constant 0 : index
      %45 = vector.load %arg5[%c0_22, %c0_23] : memref<1x32xf32, #tpu.memory_space<vmem>>, vector<1x32xf32>
      %46 = arith.addf %44, %45 : vector<1x32xf32>
      %cst_24 = arith.constant 5.000000e-01 : f32
      %47 = vector.broadcast %cst_24 : f32 to vector<1x32xf32>
      %48 = arith.mulf %47, %46 : vector<1x32xf32>
      %cst_25 = arith.constant 4.471500e-02 : f32
      %49 = vector.broadcast %cst_25 : f32 to vector<1x32xf32>
      %50 = arith.mulf %49, %46 : vector<1x32xf32>
      %51 = arith.mulf %50, %46 : vector<1x32xf32>
      %52 = arith.mulf %51, %46 : vector<1x32xf32>
      %53 = arith.addf %46, %52 : vector<1x32xf32>
      %cst_26 = arith.constant 0.797884583 : f32
      %54 = vector.broadcast %cst_26 : f32 to vector<1x32xf32>
      %55 = arith.mulf %54, %53 : vector<1x32xf32>
      %56 = math.tanh %55 : vector<1x32xf32>
      %cst_27 = arith.constant 1.000000e+00 : f32
      %57 = vector.broadcast %cst_27 : f32 to vector<1x32xf32>
      %58 = arith.addf %57, %56 : vector<1x32xf32>
      %59 = arith.mulf %48, %58 : vector<1x32xf32>
      %c0_28 = arith.constant 0 : index
      %c0_29 = arith.constant 0 : index
      %60 = vector.load %arg6[%c0_28, %c0_29] : memref<32x40xf32, #tpu.memory_space<vmem>>, vector<32x40xf32>
      %cst_30 = arith.constant dense<0.000000e+00> : vector<1x40xf32>
      %61 = tpu.matmul %59, %60, %cst_30 {dimension_numbers = #tpu.dot_dimension_numbers<[1], [0], [0], [1], [0, 0, 1, 1], [], []>} : vector<1x32xf32>, vector<32x40xf32>, vector<1x40xf32> -> vector<1x40xf32>
      %c0_31 = arith.constant 0 : index
      %c0_32 = arith.constant 0 : index
      %62 = vector.load %arg7[%c0_31, %c0_32] : memref<1x40xf32, #tpu.memory_space<vmem>>, vector<1x40xf32>
      %63 = arith.addf %61, %62 : vector<1x40xf32>
      %c0_33 = arith.constant 0 : index
      %c0_34 = arith.constant 0 : index
      %64 = vector.load %arg11[%c0_33, %c0_34] : memref<8x10xf32, #tpu.memory_space<vmem>>, vector<8x10xf32>
      %cst_35 = arith.constant dense<0.000000e+00> : vector<32x10xf32>
      %65 = tpu.matmul %38, %64, %cst_35 {dimension_numbers = #tpu.dot_dimension_numbers<[0], [0], [1], [1], [0, 1, 1, 1], [], []>} : vector<8x32xf32>, vector<8x10xf32>, vector<32x10xf32> -> vector<32x10xf32>
      %66 = vector.extract_strided_slice %65 {offsets = [0, 0], sizes = [32, 5], strides = [1, 1]} : vector<32x10xf32> to vector<32x5xf32>
      %67 = vector.extract_strided_slice %65 {offsets = [0, 5], sizes = [32, 5], strides = [1, 1]} : vector<32x10xf32> to vector<32x5xf32>
      %cst_36 = arith.constant 0.000000e+00 : f32
      %68 = vector.broadcast %cst_36 : f32 to vector<32x5xf32>
      %cst_37 = arith.constant 0.000000e+00 : f32
      %69 = vector.broadcast %cst_37 : f32 to vector<32x5xf32>
      %c0_38 = arith.constant 0 : index
      %c0_39 = arith.constant 0 : index
      %70 = vector.load %arg10[%c0_38, %c0_39] : memref<32x4xf32, #tpu.memory_space<vmem>>, vector<32x1xf32>
      %71 = vector.extract_strided_slice %63 {offsets = [0, 0], sizes = [1, 5], strides = [1, 1]} : vector<1x40xf32> to vector<1x5xf32>
      %72 = vector.broadcast %70 : vector<32x1xf32> to vector<32x5xf32>
      %73 = vector.broadcast %71 : vector<1x5xf32> to vector<32x5xf32>
      %74 = arith.mulf %72, %73 : vector<32x5xf32>
      %75 = arith.addf %68, %74 : vector<32x5xf32>
      %76 = vector.extract_strided_slice %63 {offsets = [0, 20], sizes = [1, 5], strides = [1, 1]} : vector<1x40xf32> to vector<1x5xf32>
      %77 = vector.broadcast %70 : vector<32x1xf32> to vector<32x5xf32>
      %78 = vector.broadcast %76 : vector<1x5xf32> to vector<32x5xf32>
      %79 = arith.mulf %77, %78 : vector<32x5xf32>
      %80 = arith.addf %69, %79 : vector<32x5xf32>
      %c0_40 = arith.constant 0 : index
      %c1 = arith.constant 1 : index
      %81 = vector.load %arg10[%c0_40, %c1] : memref<32x4xf32, #tpu.memory_space<vmem>>, vector<32x1xf32>
      %82 = vector.extract_strided_slice %63 {offsets = [0, 5], sizes = [1, 5], strides = [1, 1]} : vector<1x40xf32> to vector<1x5xf32>
      %83 = vector.broadcast %81 : vector<32x1xf32> to vector<32x5xf32>
      %84 = vector.broadcast %82 : vector<1x5xf32> to vector<32x5xf32>
      %85 = arith.mulf %83, %84 : vector<32x5xf32>
      %86 = arith.addf %75, %85 : vector<32x5xf32>
      %87 = vector.extract_strided_slice %63 {offsets = [0, 25], sizes = [1, 5], strides = [1, 1]} : vector<1x40xf32> to vector<1x5xf32>
      %88 = vector.broadcast %81 : vector<32x1xf32> to vector<32x5xf32>
      %89 = vector.broadcast %87 : vector<1x5xf32> to vector<32x5xf32>
      %90 = arith.mulf %88, %89 : vector<32x5xf32>
      %91 = arith.addf %80, %90 : vector<32x5xf32>
      %c0_41 = arith.constant 0 : index
      %c2 = arith.constant 2 : index
      %92 = vector.load %arg10[%c0_41, %c2] : memref<32x4xf32, #tpu.memory_space<vmem>>, vector<32x1xf32>
      %93 = vector.extract_strided_slice %63 {offsets = [0, 10], sizes = [1, 5], strides = [1, 1]} : vector<1x40xf32> to vector<1x5xf32>
      %94 = vector.broadcast %92 : vector<32x1xf32> to vector<32x5xf32>
      %95 = vector.broadcast %93 : vector<1x5xf32> to vector<32x5xf32>
      %96 = arith.mulf %94, %95 : vector<32x5xf32>
      %97 = arith.addf %86, %96 : vector<32x5xf32>
      %98 = vector.extract_strided_slice %63 {offsets = [0, 30], sizes = [1, 5], strides = [1, 1]} : vector<1x40xf32> to vector<1x5xf32>
      %99 = vector.broadcast %92 : vector<32x1xf32> to vector<32x5xf32>
      %100 = vector.broadcast %98 : vector<1x5xf32> to vector<32x5xf32>
      %101 = arith.mulf %99, %100 : vector<32x5xf32>
      %102 = arith.addf %91, %101 : vector<32x5xf32>
      %c0_42 = arith.constant 0 : index
      %c3 = arith.constant 3 : index
      %103 = vector.load %arg10[%c0_42, %c3] : memref<32x4xf32, #tpu.memory_space<vmem>>, vector<32x1xf32>
      %104 = vector.extract_strided_slice %63 {offsets = [0, 15], sizes = [1, 5], strides = [1, 1]} : vector<1x40xf32> to vector<1x5xf32>
      %105 = vector.broadcast %103 : vector<32x1xf32> to vector<32x5xf32>
      %106 = vector.broadcast %104 : vector<1x5xf32> to vector<32x5xf32>
      %107 = arith.mulf %105, %106 : vector<32x5xf32>
      %108 = arith.addf %97, %107 : vector<32x5xf32>
      %109 = vector.extract_strided_slice %63 {offsets = [0, 35], sizes = [1, 5], strides = [1, 1]} : vector<1x40xf32> to vector<1x5xf32>
      %110 = vector.broadcast %103 : vector<32x1xf32> to vector<32x5xf32>
      %111 = vector.broadcast %109 : vector<1x5xf32> to vector<32x5xf32>
      %112 = arith.mulf %110, %111 : vector<32x5xf32>
      %113 = arith.addf %102, %112 : vector<32x5xf32>
      %c0_43 = arith.constant 0 : index
      %c0_44 = arith.constant 0 : index
      %114 = vector.load %arg8[%c0_43, %c0_44] : memref<32x5xf32, #tpu.memory_space<vmem>>, vector<32x5xf32>
      %cst_45 = arith.constant 1.000000e+00 : f32
      %115 = vector.broadcast %cst_45 : f32 to vector<32x5xf32>
      %116 = arith.addf %115, %108 : vector<32x5xf32>
      %117 = arith.mulf %114, %116 : vector<32x5xf32>
      %c0_46 = arith.constant 0 : index
      %c0_47 = arith.constant 0 : index
      %118 = vector.load %arg9[%c0_46, %c0_47] : memref<32x5xf32, #tpu.memory_space<vmem>>, vector<32x5xf32>
      %119 = arith.addf %118, %113 : vector<32x5xf32>
      %120 = arith.mulf %66, %117 : vector<32x5xf32>
      %121 = arith.addf %120, %119 : vector<32x5xf32>
      %122 = arith.mulf %67, %117 : vector<32x5xf32>
      %123 = arith.mulf %121, %121 : vector<32x5xf32>
      %124 = arith.mulf %122, %122 : vector<32x5xf32>
      %125 = arith.addf %123, %124 : vector<32x5xf32>
      %126 = math.sqrt %125 : vector<32x5xf32>
      %cst_48 = arith.constant 5.000000e-01 : f32
      %127 = vector.broadcast %cst_48 : f32 to vector<32x5xf32>
      %128 = arith.mulf %127, %126 : vector<32x5xf32>
      %cst_49 = arith.constant 4.471500e-02 : f32
      %129 = vector.broadcast %cst_49 : f32 to vector<32x5xf32>
      %130 = arith.mulf %129, %126 : vector<32x5xf32>
      %131 = arith.mulf %130, %126 : vector<32x5xf32>
      %132 = arith.mulf %131, %126 : vector<32x5xf32>
      %133 = arith.addf %126, %132 : vector<32x5xf32>
      %cst_50 = arith.constant 0.797884583 : f32
      %134 = vector.broadcast %cst_50 : f32 to vector<32x5xf32>
      %135 = arith.mulf %134, %133 : vector<32x5xf32>
      %136 = math.tanh %135 : vector<32x5xf32>
      %cst_51 = arith.constant 1.000000e+00 : f32
      %137 = vector.broadcast %cst_51 : f32 to vector<32x5xf32>
      %138 = arith.addf %137, %136 : vector<32x5xf32>
      %139 = arith.mulf %128, %138 : vector<32x5xf32>
      %cst_52 = arith.constant 9.99999997E-7 : f32
      %140 = vector.broadcast %cst_52 : f32 to vector<32x5xf32>
      %141 = arith.addf %126, %140 : vector<32x5xf32>
      %142 = tpu.reciprocal %141 {approx = true} : vector<32x5xf32> -> vector<32x5xf32>
      %143 = arith.mulf %139, %142 : vector<32x5xf32>
      %144 = arith.mulf %121, %143 : vector<32x5xf32>
      %145 = arith.mulf %122, %143 : vector<32x5xf32>
      %146 = tpu.concatenate %144, %145 in 1 : vector<32x5xf32>, vector<32x5xf32> -> vector<32x10xf32>
      %c0_53 = arith.constant 0 : index
      %c0_54 = arith.constant 0 : index
      %147 = vector.load %arg12[%c0_53, %c0_54] : memref<8x10xf32, #tpu.memory_space<vmem>>, vector<8x10xf32>
      %cst_55 = arith.constant dense<0.000000e+00> : vector<8x32xf32>
      %148 = tpu.matmul %147, %146, %cst_55 {dimension_numbers = #tpu.dot_dimension_numbers<[1], [1], [0], [0], [0, 0, 1, 0], [], []>} : vector<8x10xf32>, vector<32x10xf32>, vector<8x32xf32> -> vector<8x32xf32>
      %c1_i32_56 = arith.constant 1 : i32
      %149 = tpu.dynamic_rotate %38 by %c1_i32_56 dim 0 : vector<8x32xf32>, i32 -> vector<8x32xf32>
      %c7_i32 = arith.constant 7 : i32
      %150 = tpu.dynamic_rotate %38 by %c7_i32 dim 0 : vector<8x32xf32>, i32 -> vector<8x32xf32>
      %151 = arith.select %10, %38, %149 : vector<8x32xi1>, vector<8x32xf32>
      %152 = arith.select %10, %150, %38 : vector<8x32xi1>, vector<8x32xf32>
      %153 = arith.addf %151, %152 : vector<8x32xf32>
      %cst_57 = arith.constant 5.000000e-01 : f32
      %154 = vector.broadcast %cst_57 : f32 to vector<8x32xf32>
      %155 = arith.mulf %154, %153 : vector<8x32xf32>
      %156 = arith.subf %151, %152 : vector<8x32xf32>
      %cst_58 = arith.constant 5.000000e-01 : f32
      %157 = vector.broadcast %cst_58 : f32 to vector<8x32xf32>
      %158 = arith.mulf %157, %156 : vector<8x32xf32>
      %cst_59 = arith.constant 5.000000e-01 : f32
      %159 = vector.broadcast %cst_59 : f32 to vector<8x32xf32>
      %160 = arith.mulf %159, %155 : vector<8x32xf32>
      %cst_60 = arith.constant 4.471500e-02 : f32
      %161 = vector.broadcast %cst_60 : f32 to vector<8x32xf32>
      %162 = arith.mulf %161, %155 : vector<8x32xf32>
      %163 = arith.mulf %162, %155 : vector<8x32xf32>
      %164 = arith.mulf %163, %155 : vector<8x32xf32>
      %165 = arith.addf %155, %164 : vector<8x32xf32>
      %cst_61 = arith.constant 0.797884583 : f32
      %166 = vector.broadcast %cst_61 : f32 to vector<8x32xf32>
      %167 = arith.mulf %166, %165 : vector<8x32xf32>
      %168 = math.tanh %167 : vector<8x32xf32>
      %cst_62 = arith.constant 1.000000e+00 : f32
      %169 = vector.broadcast %cst_62 : f32 to vector<8x32xf32>
      %170 = arith.addf %169, %168 : vector<8x32xf32>
      %171 = arith.mulf %160, %170 : vector<8x32xf32>
      %cst_63 = arith.constant 5.000000e-01 : f32
      %172 = vector.broadcast %cst_63 : f32 to vector<8x32xf32>
      %173 = arith.mulf %172, %158 : vector<8x32xf32>
      %cst_64 = arith.constant 4.471500e-02 : f32
      %174 = vector.broadcast %cst_64 : f32 to vector<8x32xf32>
      %175 = arith.mulf %174, %158 : vector<8x32xf32>
      %176 = arith.mulf %175, %158 : vector<8x32xf32>
      %177 = arith.mulf %176, %158 : vector<8x32xf32>
      %178 = arith.addf %158, %177 : vector<8x32xf32>
      %cst_65 = arith.constant 0.797884583 : f32
      %179 = vector.broadcast %cst_65 : f32 to vector<8x32xf32>
      %180 = arith.mulf %179, %178 : vector<8x32xf32>
      %181 = math.tanh %180 : vector<8x32xf32>
      %cst_66 = arith.constant 1.000000e+00 : f32
      %182 = vector.broadcast %cst_66 : f32 to vector<8x32xf32>
      %183 = arith.addf %182, %181 : vector<8x32xf32>
      %184 = arith.mulf %173, %183 : vector<8x32xf32>
      %cst_67 = arith.constant 0.000000e+00 : f32
      %185 = vector.broadcast %cst_67 : f32 to vector<8x32xf32>
      %186 = arith.subf %185, %184 : vector<8x32xf32>
      %187 = arith.select %10, %184, %186 : vector<8x32xi1>, vector<8x32xf32>
      %188 = arith.addf %171, %187 : vector<8x32xf32>
      %189 = vector.broadcast %5 : vector<1x1xf32> to vector<8x32xf32>
      %190 = arith.mulf %189, %188 : vector<8x32xf32>
      %cst_68 = arith.constant 1.000000e+00 : f32
      %191 = vector.broadcast %cst_68 : f32 to vector<1x1xf32>
      %192 = arith.subf %191, %5 : vector<1x1xf32>
      %193 = vector.broadcast %192 : vector<1x1xf32> to vector<8x32xf32>
      %194 = arith.mulf %193, %148 : vector<8x32xf32>
      %195 = arith.addf %190, %194 : vector<8x32xf32>
      %196 = arith.addf %16, %195 : vector<8x32xf32>
      %197 = arith.index_cast %13 : i32 to index
      %c0_69 = arith.constant 0 : index
      %c0_70 = arith.constant 0 : index
      %198 = vector.load %arg14[%197, %c0_69, %c0_70] : memref<2x8x32xf32, #tpu.memory_space<vmem>>, vector<1x8x32xf32>
      %199 = vector.shape_cast %198 : vector<1x8x32xf32> to vector<8x32xf32>
      %200 = vector.shape_cast %196 : vector<8x32xf32> to vector<1x8x32xf32>
      tpu.vector_store %arg14[%197, %c0_69, %c0_70], %200 {strides = array<i32>} : memref<2x8x32xf32, #tpu.memory_space<vmem>>, vector<1x8x32xf32>,
    }
    %c2_i32_3 = arith.constant 2 : i32
    return
  }
  func.func @transform_0(%arg0: i32) -> (i32, i32, i32) {
    %c0_i32 = arith.constant 0 : i32
    %c0_i32_0 = arith.constant 0 : i32
    %c0_i32_1 = arith.constant 0 : i32
    return %arg0, %c0_i32, %c0_i32_0 : i32, i32, i32
  }
  func.func @transform_1(%arg0: i32) -> (i32, i32) {
    %c0_i32 = arith.constant 0 : i32
    %c0_i32_0 = arith.constant 0 : i32
    %c0_i32_1 = arith.constant 0 : i32
    return %c0_i32, %c0_i32_0 : i32, i32
  }
  func.func @transform_2(%arg0: i32) -> (i32, i32) {
    %c0_i32 = arith.constant 0 : i32
    %c0_i32_0 = arith.constant 0 : i32
    %c0_i32_1 = arith.constant 0 : i32
    return %c0_i32, %c0_i32_0 : i32, i32
  }
  func.func @transform_3(%arg0: i32) -> (i32, i32) {
    %c0_i32 = arith.constant 0 : i32
    %c0_i32_0 = arith.constant 0 : i32
    %c0_i32_1 = arith.constant 0 : i32
    return %c0_i32, %c0_i32_0 : i32, i32
  }
  func.func @transform_4(%arg0: i32) -> (i32, i32) {
    %c0_i32 = arith.constant 0 : i32
    %c0_i32_0 = arith.constant 0 : i32
    %c0_i32_1 = arith.constant 0 : i32
    return %c0_i32, %c0_i32_0 : i32, i32
  }
  func.func @transform_5(%arg0: i32) -> (i32, i32) {
    %c0_i32 = arith.constant 0 : i32
    %c0_i32_0 = arith.constant 0 : i32
    %c0_i32_1 = arith.constant 0 : i32
    return %c0_i32, %c0_i32_0 : i32, i32
  }
  func.func @transform_6(%arg0: i32) -> (i32, i32) {
    %c0_i32 = arith.constant 0 : i32
    %c0_i32_0 = arith.constant 0 : i32
    %c0_i32_1 = arith.constant 0 : i32
    return %c0_i32, %c0_i32_0 : i32, i32
  }
  func.func @transform_7(%arg0: i32) -> (i32, i32) {
    %c0_i32 = arith.constant 0 : i32
    %c0_i32_0 = arith.constant 0 : i32
    %c0_i32_1 = arith.constant 0 : i32
    return %c0_i32, %c0_i32_0 : i32, i32
  }
  func.func @transform_8(%arg0: i32) -> (i32, i32) {
    %c0_i32 = arith.constant 0 : i32
    %c0_i32_0 = arith.constant 0 : i32
    %c0_i32_1 = arith.constant 0 : i32
    return %c0_i32, %c0_i32_0 : i32, i32
  }
  func.func @transform_9(%arg0: i32) -> (i32, i32) {
    %c0_i32 = arith.constant 0 : i32
    %c0_i32_0 = arith.constant 0 : i32
    %c0_i32_1 = arith.constant 0 : i32
    return %c0_i32, %c0_i32_0 : i32, i32
  }
  func.func @transform_10(%arg0: i32) -> (i32, i32) {
    %c0_i32 = arith.constant 0 : i32
    %c0_i32_0 = arith.constant 0 : i32
    %c0_i32_1 = arith.constant 0 : i32
    return %c0_i32, %c0_i32_0 : i32, i32
  }
  func.func @transform_11(%arg0: i32) -> (i32, i32) {
    %c0_i32 = arith.constant 0 : i32
    %c0_i32_0 = arith.constant 0 : i32
    %c0_i32_1 = arith.constant 0 : i32
    return %c0_i32, %c0_i32_0 : i32, i32
  }
  func.func @transform_12(%arg0: i32) -> (i32, i32) {
    %c0_i32 = arith.constant 0 : i32
    %c0_i32_0 = arith.constant 0 : i32
    %c0_i32_1 = arith.constant 0 : i32
    return %c0_i32, %c0_i32_0 : i32, i32
  }
  func.func @transform_13(%arg0: i32) -> (i32, i32, i32) {
    %c0_i32 = arith.constant 0 : i32
    %c0_i32_0 = arith.constant 0 : i32
    %c0_i32_1 = arith.constant 0 : i32
    return %arg0, %c0_i32, %c0_i32_0 : i32, i32, i32
  }
}

</mosaic_0001>

<llo_original>
// kernel: tpu_custom_call.1
$region0: #{tpu_custom_call.1}
  #allocation0 [shape = 'u32[]', space=smem, size = 0x4, offset = 0x4, fixed_abs, tag = 'smem constant byte address 0x4 - core index']
  #allocation1 [shape = 'u32[144,128]{1,0:T(1,128)}', space=vmem, size = 0x12000, scoped, tag = 'internal scratch']
  #allocation2 [shape = 'f32[1,1]{1,0:T(1,128)S(1)}', space=vmem, size = 0x200, scoped, tag = 'scoped memory for tpu_custom_call.1']
  %s0 = inlined_call_operand.vmem [shape: f32[4,8,32], index: 0, kind: input, shape index: {}]
  %s1 = inlined_call_operand.vmem [shape: f32[1,32], index: 1, kind: input, shape index: {}]
  %s2 = inlined_call_operand.vmem [shape: f32[1,32], index: 2, kind: input, shape index: {}]
  %s3 = inlined_call_operand.vmem [shape: f32[32,32], index: 3, kind: input, shape index: {}]
  %s4 = inlined_call_operand.hbm [shape: f32[1,32], index: 4, kind: input, shape index: {}]
  %s5 = inlined_call_operand.vmem [shape: f32[32,40], index: 5, kind: input, shape index: {}]
  %s6 = inlined_call_operand.vmem [shape: f32[1,40], index: 6, kind: input, shape index: {}]
  %s7 = inlined_call_operand.vmem [shape: f32[32,5], index: 7, kind: input, shape index: {}]
  %s8 = inlined_call_operand.vmem [shape: f32[32,5], index: 8, kind: input, shape index: {}]
  %s9 = inlined_call_operand.vmem [shape: f32[32,4], index: 9, kind: input, shape index: {}]
  %s10 = inlined_call_operand.vmem [shape: f32[8,10], index: 10, kind: input, shape index: {}]
  %s11 = inlined_call_operand.vmem [shape: f32[8,10], index: 11, kind: input, shape index: {}]
  %s12 = inlined_call_operand.<no memory space> [shape: f32[1,1], index: 12, kind: input, shape index: {}]
  %s13 = inlined_call_operand.hbm [shape: f32[4,8,32], index: 13, kind: output, shape index: {}]
  %s14 = sld [smem:[#allocation0]]
  $region96: #{tpu_custom_call.1} parent=0
    _
  %s16 = ssub.s32 1, %s14
  %s17 = scalar_select 0, %s16, %s14
  %v18 = vstv %s12
  %19 = vst [vmem:[#allocation2] sm:$0x1] %v18
  $region1: #{tpu_custom_call.1} parent=0
    #allocation3 [shape = 'u8[512]{0}', space=vmem, size = 0x400, scoped, tag = 'input window, operand 4, single buffered']
    #allocation4 [shape = 's32[2]{0}', space=sflag, size = 0x8, scoped, tag = 'scoped memory for tpu_custom_call.1']
    #allocation5 [shape = 's32[2]{0}', space=sflag, size = 0x8, scoped, tag = 'scoped memory for tpu_custom_call.1']
    #allocation6 [shape = 'u8[16384]{0}', space=vmem, size = 0x4000, scoped, tag = 'output window, operand 0']
    %20 = vsyncpa [#allocation4], 0
    %21 = vsyncpa [#allocation5], 0
    %s22 = scalar_lea.sflag [#allocation5], 1
    %23 = vsyncpa %s22, 0
    loop: start=0, step=1, limit=4
    $region2: #{tpu_custom_call.1} parent=1 // loop_pre_header
      _
    $region3: #{tpu_custom_call.1} parent=1 // loop_header
      %s25 = sphi 0, %s29
      %p26 = scmp.ge.s32.totalorder %s25, 4
      %s35 = sphi 0, %s37
      %s38 = sphi 0, %s35
      %s39 = sphi 0, %s38
      %s55 = sphi 0, %s39
      %s59 = sphi 0, %s59
      %s61 = sphi 0, %s59
      %s62 = sphi 0, %s61
      %s76 = sphi 0, %s62
      %s80 = sphi 0, %s80
      %s82 = sphi 0, %s80
      %s83 = sphi 0, %s82
      %s97 = sphi 0, %s83
      %s101 = sphi 0, %s101
      %s103 = sphi 0, %s101
      %s104 = sphi 0, %s103
      %s118 = sphi 0, %s104
      %s122 = sphi 0, %s122
      %s124 = sphi 0, %s122
      %s125 = sphi 0, %s124
      %s139 = sphi 0, %s125
      %s143 = sphi 0, %s143
      %s145 = sphi 0, %s143
      %s146 = sphi 0, %s145
      %s160 = sphi 0, %s146
      %s164 = sphi 0, %s164
      %s166 = sphi 0, %s164
      %s167 = sphi 0, %s166
      %s181 = sphi 0, %s167
      %s185 = sphi 0, %s185
      %s187 = sphi 0, %s185
      %s188 = sphi 0, %s187
      %s202 = sphi 0, %s188
      %s206 = sphi 0, %s206
      %s208 = sphi 0, %s206
      %s209 = sphi 0, %s208
      %s223 = sphi 0, %s209
      %s227 = sphi 0, %s227
      %s229 = sphi 0, %s227
      %s230 = sphi 0, %s229
      %s244 = sphi 0, %s230
      %s248 = sphi 0, %s248
      %s250 = sphi 0, %s248
      %s251 = sphi 0, %s250
      %s265 = sphi 0, %s251
      %s269 = sphi 0, %s269
      %s271 = sphi 0, %s269
      %s272 = sphi 0, %s271
      %s286 = sphi 0, %s272
      %s290 = sphi 0, %s290
      %s292 = sphi 0, %s290
      %s293 = sphi 0, %s292
      %s307 = sphi 0, %s293
      %s313 = sphi 0, %s315
      %s316 = sphi 0, %s313
      %s317 = sphi 0, %s316
      %s333 = sphi 0, %s317
    $region4: #{tpu_custom_call.1} parent=1 // loop_header_branch
      %28 = sbr.rel (%p26) target = $region8
    $region5: #{tpu_custom_call.1} parent=1 // loop_body
      %s30 = ssub.s32 %s25, 1
      %s31 = ssub.s32 %s25, 2
      %s32 = sadd.s32 %s25, 1
      %s33 = ssub.s32 %s25, %s32
      %p34 = scmp.eq.s32.totalorder %s33, 0
      %s36 = sadd.s32 %s35, 1
      %s37 = scalar_select %p34, %s35, %s36
      %p40 = pneg %p34
      %p41 = scmp.eq.s32.totalorder %s25, 1
      %p42 = por %p40, %p41
      %p43 = scmp.ne.s32.totalorder %s35, %s38
      %p44 = scmp.eq.s32.totalorder %s25, 0
      %p45 = por %p43, %p44
      %p46 = scmp.ne.s32.totalorder %s35, %s38
      %p47 = scmp.eq.s32.totalorder %s30, 1
      %p48 = por %p46, %p47
      %p49 = scmp.ne.s32.totalorder %s38, %s39
      %p50 = scmp.eq.s32.totalorder %s30, 0
      %p51 = por %p49, %p50
      %p52 = scmp.ne.s32.totalorder %s38, %s39
      %p53 = scmp.eq.s32.totalorder %s31, 1
      %p54 = por %p52, %p53
      %p56 = scmp.ne.s32.totalorder %s39, %s55
      %p57 = scmp.eq.s32.totalorder %s31, 0
      %p58 = por %p56, %p57
      %s60 = sadd.s32 %s59, 1
      %p63 = scmp.eq.s32.totalorder %s25, 1
      %p64 = scmp.ne.s32.totalorder %s59, %s61
      %p65 = scmp.eq.s32.totalorder %s25, 0
      %p66 = por %p64, %p65
      %p67 = scmp.ne.s32.totalorder %s59, %s61
      %p68 = scmp.eq.s32.totalorder %s30, 1
      %p69 = por %p67, %p68
      %p70 = scmp.ne.s32.totalorder %s61, %s62
      %p71 = scmp.eq.s32.totalorder %s30, 0
      %p72 = por %p70, %p71
      %p73 = scmp.ne.s32.totalorder %s61, %s62
      %p74 = scmp.eq.s32.totalorder %s31, 1
      %p75 = por %p73, %p74
      %p77 = scmp.ne.s32.totalorder %s62, %s76
      %p78 = scmp.eq.s32.totalorder %s31, 0
      %p79 = por %p77, %p78
      %s81 = sadd.s32 %s80, 1
      %p84 = scmp.eq.s32.totalorder %s25, 1
      %p85 = scmp.ne.s32.totalorder %s80, %s82
      %p86 = scmp.eq.s32.totalorder %s25, 0
      %p87 = por %p85, %p86
      %p88 = scmp.ne.s32.totalorder %s80, %s82
      %p89 = scmp.eq.s32.totalorder %s30, 1
      %p90 = por %p88, %p89
      %p91 = scmp.ne.s32.totalorder %s82, %s83
      %p92 = scmp.eq.s32.totalorder %s30, 0
      %p93 = por %p91, %p92
      %p94 = scmp.ne.s32.totalorder %s82, %s83
      %p95 = scmp.eq.s32.totalorder %s31, 1
      %p96 = por %p94, %p95
      %p98 = scmp.ne.s32.totalorder %s83, %s97
      %p99 = scmp.eq.s32.totalorder %s31, 0
      %p100 = por %p98, %p99
      %s102 = sadd.s32 %s101, 1
      %p105 = scmp.eq.s32.totalorder %s25, 1
      %p106 = scmp.ne.s32.totalorder %s101, %s103
      %p107 = scmp.eq.s32.totalorder %s25, 0
      %p108 = por %p106, %p107
      %p109 = scmp.ne.s32.totalorder %s101, %s103
      %p110 = scmp.eq.s32.totalorder %s30, 1
      %p111 = por %p109, %p110
      %p112 = scmp.ne.s32.totalorder %s103, %s104
      %p113 = scmp.eq.s32.totalorder %s30, 0
      %p114 = por %p112, %p113
      %p115 = scmp.ne.s32.totalorder %s103, %s104
      %p116 = scmp.eq.s32.totalorder %s31, 1
      %p117 = por %p115, %p116
      %p119 = scmp.ne.s32.totalorder %s104, %s118
      %p120 = scmp.eq.s32.totalorder %s31, 0
      %p121 = por %p119, %p120
      %s123 = sadd.s32 %s122, 1
      %p126 = scmp.eq.s32.totalorder %s25, 1
      %p127 = scmp.ne.s32.totalorder %s122, %s124
      %p128 = scmp.eq.s32.totalorder %s25, 0
      %p129 = por %p127, %p128
      %p130 = scmp.ne.s32.totalorder %s122, %s124
      %p131 = scmp.eq.s32.totalorder %s30, 1
      %p132 = por %p130, %p131
      %p133 = scmp.ne.s32.totalorder %s124, %s125
      %p134 = scmp.eq.s32.totalorder %s30, 0
      %p135 = por %p133, %p134
      %p136 = scmp.ne.s32.totalorder %s124, %s125
      %p137 = scmp.eq.s32.totalorder %s31, 1
      %p138 = por %p136, %p137
      %p140 = scmp.ne.s32.totalorder %s125, %s139
      %p141 = scmp.eq.s32.totalorder %s31, 0
      %p142 = por %p140, %p141
      %s144 = sadd.s32 %s143, 1
      %p147 = scmp.eq.s32.totalorder %s25, 1
      %p148 = scmp.ne.s32.totalorder %s143, %s145
      %p149 = scmp.eq.s32.totalorder %s25, 0
      %p150 = por %p148, %p149
      %p151 = scmp.ne.s32.totalorder %s143, %s145
      %p152 = scmp.eq.s32.totalorder %s30, 1
      %p153 = por %p151, %p152
      %p154 = scmp.ne.s32.totalorder %s145, %s146
      %p155 = scmp.eq.s32.totalorder %s30, 0
      %p156 = por %p154, %p155
      %p157 = scmp.ne.s32.totalorder %s145, %s146
      %p158 = scmp.eq.s32.totalorder %s31, 1
      %p159 = por %p157, %p158
      %p161 = scmp.ne.s32.totalorder %s146, %s160
      %p162 = scmp.eq.s32.totalorder %s31, 0
      %p163 = por %p161, %p162
      %s165 = sadd.s32 %s164, 1
      %p168 = scmp.eq.s32.totalorder %s25, 1
      %p169 = scmp.ne.s32.totalorder %s164, %s166
      %p170 = scmp.eq.s32.totalorder %s25, 0
      %p171 = por %p169, %p170
      %p172 = scmp.ne.s32.totalorder %s164, %s166
      %p173 = scmp.eq.s32.totalorder %s30, 1
      %p174 = por %p172, %p173
      %p175 = scmp.ne.s32.totalorder %s166, %s167
      %p176 = scmp.eq.s32.totalorder %s30, 0
      %p177 = por %p175, %p176
      %p178 = scmp.ne.s32.totalorder %s166, %s167
      %p179 = scmp.eq.s32.totalorder %s31, 1
      %p180 = por %p178, %p179
      %p182 = scmp.ne.s32.totalorder %s167, %s181
      %p183 = scmp.eq.s32.totalorder %s31, 0
      %p184 = por %p182, %p183
      %s186 = sadd.s32 %s185, 1
      %p189 = scmp.eq.s32.totalorder %s25, 1
      %p190 = scmp.ne.s32.totalorder %s185, %s187
      %p191 = scmp.eq.s32.totalorder %s25, 0
      %p192 = por %p190, %p191
      %p193 = scmp.ne.s32.totalorder %s185, %s187
      %p194 = scmp.eq.s32.totalorder %s30, 1
      %p195 = por %p193, %p194
      %p196 = scmp.ne.s32.totalorder %s187, %s188
      %p197 = scmp.eq.s32.totalorder %s30, 0
      %p198 = por %p196, %p197
      %p199 = scmp.ne.s32.totalorder %s187, %s188
      %p200 = scmp.eq.s32.totalorder %s31, 1
      %p201 = por %p199, %p200
      %p203 = scmp.ne.s32.totalorder %s188, %s202
      %p204 = scmp.eq.s32.totalorder %s31, 0
      %p205 = por %p203, %p204
      %s207 = sadd.s32 %s206, 1
      %p210 = scmp.eq.s32.totalorder %s25, 1
      %p211 = scmp.ne.s32.totalorder %s206, %s208
      %p212 = scmp.eq.s32.totalorder %s25, 0
      %p213 = por %p211, %p212
      %p214 = scmp.ne.s32.totalorder %s206, %s208
      %p215 = scmp.eq.s32.totalorder %s30, 1
      %p216 = por %p214, %p215
      %p217 = scmp.ne.s32.totalorder %s208, %s209
      %p218 = scmp.eq.s32.totalorder %s30, 0
      %p219 = por %p217, %p218
      %p220 = scmp.ne.s32.totalorder %s208, %s209
      %p221 = scmp.eq.s32.totalorder %s31, 1
      %p222 = por %p220, %p221
      %p224 = scmp.ne.s32.totalorder %s209, %s223
      %p225 = scmp.eq.s32.totalorder %s31, 0
      %p226 = por %p224, %p225
      %s228 = sadd.s32 %s227, 1
      %p231 = scmp.eq.s32.totalorder %s25, 1
      %p232 = scmp.ne.s32.totalorder %s227, %s229
      %p233 = scmp.eq.s32.totalorder %s25, 0
      %p234 = por %p232, %p233
      %p235 = scmp.ne.s32.totalorder %s227, %s229
      %p236 = scmp.eq.s32.totalorder %s30, 1
      %p237 = por %p235, %p236
      %p238 = scmp.ne.s32.totalorder %s229, %s230
      %p239 = scmp.eq.s32.totalorder %s30, 0
      %p240 = por %p238, %p239
      %p241 = scmp.ne.s32.totalorder %s229, %s230
      %p242 = scmp.eq.s32.totalorder %s31, 1
      %p243 = por %p241, %p242
      %p245 = scmp.ne.s32.totalorder %s230, %s244
      %p246 = scmp.eq.s32.totalorder %s31, 0
      %p247 = por %p245, %p246
      %s249 = sadd.s32 %s248, 1
      %p252 = scmp.eq.s32.totalorder %s25, 1
      %p253 = scmp.ne.s32.totalorder %s248, %s250
      %p254 = scmp.eq.s32.totalorder %s25, 0
      %p255 = por %p253, %p254
      %p256 = scmp.ne.s32.totalorder %s248, %s250
      %p257 = scmp.eq.s32.totalorder %s30, 1
      %p258 = por %p256, %p257
      %p259 = scmp.ne.s32.totalorder %s250, %s251
      %p260 = scmp.eq.s32.totalorder %s30, 0
      %p261 = por %p259, %p260
      %p262 = scmp.ne.s32.totalorder %s250, %s251
      %p263 = scmp.eq.s32.totalorder %s31, 1
      %p264 = por %p262, %p263
      %p266 = scmp.ne.s32.totalorder %s251, %s265
      %p267 = scmp.eq.s32.totalorder %s31, 0
      %p268 = por %p266, %p267
      %s270 = sadd.s32 %s269, 1
      %p273 = scmp.eq.s32.totalorder %s25, 1
      %p274 = scmp.ne.s32.totalorder %s269, %s271
      %p275 = scmp.eq.s32.totalorder %s25, 0
      %p276 = por %p274, %p275
      %p277 = scmp.ne.s32.totalorder %s269, %s271
      %p278 = scmp.eq.s32.totalorder %s30, 1
      %p279 = por %p277, %p278
      %p280 = scmp.ne.s32.totalorder %s271, %s272
      %p281 = scmp.eq.s32.totalorder %s30, 0
      %p282 = por %p280, %p281
      %p283 = scmp.ne.s32.totalorder %s271, %s272
      %p284 = scmp.eq.s32.totalorder %s31, 1
      %p285 = por %p283, %p284
      %p287 = scmp.ne.s32.totalorder %s272, %s286
      %p288 = scmp.eq.s32.totalorder %s31, 0
      %p289 = por %p287, %p288
      %s291 = sadd.s32 %s290, 1
      %p294 = scmp.eq.s32.totalorder %s25, 1
      %p295 = scmp.ne.s32.totalorder %s290, %s292
      %p296 = scmp.eq.s32.totalorder %s25, 0
      %p297 = por %p295, %p296
      %p298 = scmp.ne.s32.totalorder %s290, %s292
      %p299 = scmp.eq.s32.totalorder %s30, 1
      %p300 = por %p298, %p299
      %p301 = scmp.ne.s32.totalorder %s292, %s293
      %p302 = scmp.eq.s32.totalorder %s30, 0
      %p303 = por %p301, %p302
      %p304 = scmp.ne.s32.totalorder %s292, %s293
      %p305 = scmp.eq.s32.totalorder %s31, 1
      %p306 = por %p304, %p305
      %p308 = scmp.ne.s32.totalorder %s293, %s307
      %p309 = scmp.eq.s32.totalorder %s31, 0
      %p310 = por %p308, %p309
      %s311 = ssub.s32 %s25, %s32
      %p312 = scmp.eq.s32.totalorder %s311, 0
      %s314 = sadd.s32 %s313, 1
      %s315 = scalar_select %p312, %s313, %s314
      %p318 = pneg %p312
      %p319 = scmp.eq.s32.totalorder %s25, 1
      %p320 = por %p318, %p319
      %p321 = scmp.ne.s32.totalorder %s313, %s316
      %p322 = scmp.eq.s32.totalorder %s25, 0
      %p323 = por %p321, %p322
      %p324 = scmp.ne.s32.totalorder %s313, %s316
      %p325 = scmp.eq.s32.totalorder %s30, 1
      %p326 = por %p324, %p325
      %p327 = scmp.ne.s32.totalorder %s316, %s317
      %p328 = scmp.eq.s32.totalorder %s30, 0
      %p329 = por %p327, %p328
      %p330 = scmp.ne.s32.totalorder %s316, %s317
      %p331 = scmp.eq.s32.totalorder %s31, 1
      %p332 = por %p330, %p331
      %p334 = scmp.ne.s32.totalorder %s317, %s333
      %p335 = scmp.eq.s32.totalorder %s31, 0
      %p336 = por %p334, %p335
      %p337 = scmp.le.s32.totalorder 1, %s25
      %p338 = scmp.lt.s32.totalorder %s25, 3
      %p339 = pnand %p337, %p338
      %p340 = pneg %p339
      // Predicated region
      $region9: #{tpu_custom_call.1} parent=5 // pred_check
        _
      $region10: #{tpu_custom_call.1} parent=5 // pred_check_branch
        %342 = sbr.rel (%p339) target = $region12
      $region11: #{tpu_custom_call.1} parent=5 // pred_region
        %s343 = ssub.s32 %s25, 1
        // Predicated region
        $region13: #{tpu_custom_call.1} parent=11 // pred_check
          %p344 = pneg %p72
        $region14: #{tpu_custom_call.1} parent=11 // pred_check_branch
          %346 = sbr.rel (%p344) target = $region16
        $region15: #{tpu_custom_call.1} parent=11 // pred_region
          _
        $region16: #{tpu_custom_call.1} parent=11 // pred_fallthru
          _
        // Predicated region
        $region17: #{tpu_custom_call.1} parent=11 // pred_check
          %p347 = pneg %p93
        $region18: #{tpu_custom_call.1} parent=11 // pred_check_branch
          %349 = sbr.rel (%p347) target = $region20
        $region19: #{tpu_custom_call.1} parent=11 // pred_region
          _
        $region20: #{tpu_custom_call.1} parent=11 // pred_fallthru
          _
        // Predicated region
        $region21: #{tpu_custom_call.1} parent=11 // pred_check
          %p350 = pneg %p114
        $region22: #{tpu_custom_call.1} parent=11 // pred_check_branch
          %352 = sbr.rel (%p350) target = $region24
        $region23: #{tpu_custom_call.1} parent=11 // pred_region
          _
        $region24: #{tpu_custom_call.1} parent=11 // pred_fallthru
          _
        // Predicated region
        $region25: #{tpu_custom_call.1} parent=11 // pred_check
          %p353 = pneg %p135
        $region26: #{tpu_custom_call.1} parent=11 // pred_check_branch
          %355 = sbr.rel (%p353) target = $region28
        $region27: #{tpu_custom_call.1} parent=11 // pred_region
          %s357 = ssub.s32 16, 16
          %358 = vsyncadd [#allocation4], %s357
          %s360 = sshll.u32 [#allocation3], 4
          %s361 = int_to_ptr.vmem [resolvable:$true] %s360
          %363 = dma.hbm_to_vmem [thread:$0]  %s4, 16, %s361, [#allocation4]
        $region28: #{tpu_custom_call.1} parent=11 // pred_fallthru
          _
        // Predicated region
        $region29: #{tpu_custom_call.1} parent=11 // pred_check
          %p364 = pneg %p156
        $region30: #{tpu_custom_call.1} parent=11 // pred_check_branch
          %366 = sbr.rel (%p364) target = $region32
        $region31: #{tpu_custom_call.1} parent=11 // pred_region
          _
        $region32: #{tpu_custom_call.1} parent=11 // pred_fallthru
          _
        // Predicated region
        $region33: #{tpu_custom_call.1} parent=11 // pred_check
          %p367 = pneg %p177
        $region34: #{tpu_custom_call.1} parent=11 // pred_check_branch
          %369 = sbr.rel (%p367) target = $region36
        $region35: #{tpu_custom_call.1} parent=11 // pred_region
          _
        $region36: #{tpu_custom_call.1} parent=11 // pred_fallthru
          _
        // Predicated region
        $region37: #{tpu_custom_call.1} parent=11 // pred_check
          %p370 = pneg %p198
        $region38: #{tpu_custom_call.1} parent=11 // pred_check_branch
          %372 = sbr.rel (%p370) target = $region40
        $region39: #{tpu_custom_call.1} parent=11 // pred_region
          _
        $region40: #{tpu_custom_call.1} parent=11 // pred_fallthru
          _
        // Predicated region
        $region41: #{tpu_custom_call.1} parent=11 // pred_check
          %p373 = pneg %p219
        $region42: #{tpu_custom_call.1} parent=11 // pred_check_branch
          %375 = sbr.rel (%p373) target = $region44
        $region43: #{tpu_custom_call.1} parent=11 // pred_region
          _
        $region44: #{tpu_custom_call.1} parent=11 // pred_fallthru
          _
        // Predicated region
        $region45: #{tpu_custom_call.1} parent=11 // pred_check
          %p376 = pneg %p240
        $region46: #{tpu_custom_call.1} parent=11 // pred_check_branch
          %378 = sbr.rel (%p376) target = $region48
        $region47: #{tpu_custom_call.1} parent=11 // pred_region
          _
        $region48: #{tpu_custom_call.1} parent=11 // pred_fallthru
          _
        // Predicated region
        $region49: #{tpu_custom_call.1} parent=11 // pred_check
          %p379 = pneg %p261
        $region50: #{tpu_custom_call.1} parent=11 // pred_check_branch
          %381 = sbr.rel (%p379) target = $region52
        $region51: #{tpu_custom_call.1} parent=11 // pred_region
          _
        $region52: #{tpu_custom_call.1} parent=11 // pred_fallthru
          _
        // Predicated region
        $region53: #{tpu_custom_call.1} parent=11 // pred_check
          %p382 = pneg %p282
        $region54: #{tpu_custom_call.1} parent=11 // pred_check_branch
          %384 = sbr.rel (%p382) target = $region56
        $region55: #{tpu_custom_call.1} parent=11 // pred_region
          _
        $region56: #{tpu_custom_call.1} parent=11 // pred_fallthru
          _
        // Predicated region
        $region57: #{tpu_custom_call.1} parent=11 // pred_check
          %p385 = pneg %p303
        $region58: #{tpu_custom_call.1} parent=11 // pred_check_branch
          %387 = sbr.rel (%p385) target = $region60
        $region59: #{tpu_custom_call.1} parent=11 // pred_region
          _
        $region60: #{tpu_custom_call.1} parent=11 // pred_fallthru
          _
      $region12: #{tpu_custom_call.1} parent=5 // pred_fallthru
        _
      %p388 = scmp.lt.s32.totalorder %s25, 2
      // Predicated region
      $region61: #{tpu_custom_call.1} parent=5 // pred_check
        %p389 = pneg %p388
      $region62: #{tpu_custom_call.1} parent=5 // pred_check_branch
        %391 = sbr.rel (%p389) target = $region64
      $region63: #{tpu_custom_call.1} parent=5 // pred_region
        // Predicated region
        $region65: #{tpu_custom_call.1} parent=63 // pred_check
          %p392 = pneg %p45
        $region66: #{tpu_custom_call.1} parent=63 // pred_check_branch
          %394 = sbr.rel (%p392) target = $region68
        $region67: #{tpu_custom_call.1} parent=63 // pred_region
          %s395 = smul.u32 2, %s25
          %p396 = scmp.lt.s32.totalorder %s395, 3
          %s397 = scalar_select %p396, %s395, 3
          %s398 = smul.addr %s397, 8
          %s399 = scalar_lea.vmem %s0, %s398
          %s400 = smul.u32 2, %s25
        $region68: #{tpu_custom_call.1} parent=63 // pred_fallthru
          _
      $region64: #{tpu_custom_call.1} parent=5 // pred_fallthru
        _
      %p401 = scmp.le.s32.totalorder 1, %s25
      %p402 = scmp.lt.s32.totalorder %s25, 3
      %p403 = pnand %p401, %p402
      %p404 = pneg %p403
      // Predicated region
      $region69: #{tpu_custom_call.1} parent=5 // pred_check
        _
      $region70: #{tpu_custom_call.1} parent=5 // pred_check_branch
        %406 = sbr.rel (%p403) target = $region72
      $region71: #{tpu_custom_call.1} parent=5 // pred_region
        %s407 = ssub.s32 %s25, 1
        // Predicated region
        $region73: #{tpu_custom_call.1} parent=71 // pred_check
          %p408 = pneg %p135
        $region74: #{tpu_custom_call.1} parent=71 // pred_check_branch
          %410 = sbr.rel (%p408) target = $region76
        $region75: #{tpu_custom_call.1} parent=71 // pred_region
          %411 = dma.done [#allocation4], 16
        $region76: #{tpu_custom_call.1} parent=71 // pred_fallthru
          _
        %s412 = smul.u32 2, %s30
        %p413 = scmp.lt.s32.totalorder %s412, 3
        %s414 = scalar_select %p413, %s412, 3
        %s415 = smul.addr %s414, 8
        %s416 = scalar_lea.vmem %s0, %s415
        %p417 = pneg %p51
        %p418 = pneg %p48
        %p419 = pneg %p72
        %p420 = pneg %p69
        %p421 = pneg %p93
        %p422 = pneg %p90
        %p423 = pneg %p114
        %p424 = pneg %p111
        %p425 = pneg %p135
        %p426 = pneg %p132
        %p427 = pneg %p156
        %p428 = pneg %p153
        %p429 = pneg %p177
        %p430 = pneg %p174
        %p431 = pneg %p198
        %p432 = pneg %p195
        %p433 = pneg %p219
        %p434 = pneg %p216
        %p435 = pneg %p240
        %p436 = pneg %p237
        %p437 = pneg %p261
        %p438 = pneg %p258
        %p439 = pneg %p282
        %p440 = pneg %p279
        %p441 = pneg %p303
        %p442 = pneg %p300
        %p443 = pneg %p329
        %p444 = pneg %p326
        %s445 = sand.u32 %s316, 1
        %s446 = scalar_lea.sflag [#allocation5], %s445
        %s447 = sand.u32 %s316, 1
        %s448 = smul.addr %s447, 16
        %s449 = scalar_lea.vmem [#allocation6], %s448
        %s450 = smul.u32 2, %s30
        %p451 = scmp.lt.s32.totalorder %s450, 3
        %s452 = scalar_select %p451, %s450, 3
        %s453 = smul.addr %s452, 8
        %s454 = scalar_lea.vmem %s0, %s453
        %s455 = smul.u32 2, %s30
        %s456 = smul.u32 2, %s30
        %v457 = vld [vmem:[#allocation2] sm:$0x1]
        %v458 = vxor.u32 %v457, 2147483648
        %v459 = vmul.f32 %v458, 1.442695
        %v460 = vpow.pop %v459
        %v461 = vadd.f32 %v460, 1.0
        %v462 = vrcp.pop %v461
        %v463 = vmul.f32 1.0, %v462
        %v464 = vlaneseq
        %v465 = vshrl.u32 %v464, 7
        %v466 = vand.u32 %v465, 1
        %vm467 = vcmp.eq.s32.totalorder %v466, 0
        loop: start=0, step=1, limit=2
        $region77: #{tpu_custom_call.1} parent=71 // loop_pre_header
          _
        $region78: #{tpu_custom_call.1} parent=71 // loop_header
          %s469 = sphi 0, %s473
          %p470 = scmp.ge.s32.totalorder %s469, 2
        $region79: #{tpu_custom_call.1} parent=71 // loop_header_branch
          %472 = sbr.rel (%p470) target = $region83
        $region80: #{tpu_custom_call.1} parent=71 // loop_body
          %s474 = smul.u32 %s469, 8
          %s475 = scalar_lea.vmem %s454, %s474
          %v476 = vld [vmem:[%s475] sm:$0xff]
          %vm477 = vcmask 261120
          %v478 = vsel %vm477, %v476, 0.0
          %479 = vadd.xlane.f32.xlu0 %v478
          %v480 = vpop.xlane.xlu0 %479
          %v481 = vrcp.pop 32.0
          %v482 = vmul.f32 %v480, %v481
          %v483 = vsub.f32 %v476, %v482
          %v484 = vmul.f32 %v483, %v483
          %v485 = vsel %vm477, %v484, 0.0
          %486 = vadd.xlane.f32.xlu0 %v485
          %v487 = vpop.xlane.xlu0 %486
          %v488 = vmul.f32 %v487, %v481
          %v489 = vadd.f32 %v488, 1e-05
          %v490 = vrsqrt.pop %v489
          %v491 = vmul.f32 %v483, %v490
          %v492 = vld [vmem:[%s1] sm:$0x1]
          %v494 = vlaneseq
          %v495 = vshrl.u32 %v494, 7
          %v496 = vsub.s32 0, %v495
          %v497 = vrot.slane %v492, %v496
          %v499 = vmul.f32 %v491, %v497
          %v500 = vld [vmem:[%s2] sm:$0x1]
          %v502 = vlaneseq
          %v503 = vshrl.u32 %v502, 7
          %v504 = vsub.s32 0, %v503
          %v505 = vrot.slane %v500, %v504
          %v507 = vadd.f32 %v499, %v505
          %v508 = vsel %vm477, %v507, 0.0
          %v509 = vrot.slane %v508, 4
          %v510 = vadd.f32 %v508, %v509
          %v511 = vrot.slane %v510, 2
          %v512 = vadd.f32 %v510, %v511
          %v513 = vrot.slane %v512, 1
          %v514 = vadd.f32 %v512, %v513
          %v515 = vrcp.pop 8.0
          %v516 = vmul.f32 %v514, %v515
          %v517 = vld [vmem:[%s3] sm:$0xff]
          %v518 = vld [vmem:[%s3 + $0x8] sm:$0xff]
          %v519 = vld [vmem:[%s3 + $0x10] sm:$0xff]
          %v520 = vld [vmem:[%s3 + $0x18] sm:$0xff]
          %v521 = vld [vmem:[#allocation3] sm:$0x1]
          %v523 = vsel %vm477, %v516, 0
          %525 = vmatprep.subr.mxu0 0.0
          %526 = vmatpush1.msra.mxu0 %v517
          %527 = vmatprep.subr.mxu0 0.0
          %528 = vmatpush1.msra.mxu0 %v518
          %529 = vmatprep.subr.mxu0 0.0
          %530 = vmatpush1.msra.mxu0 %v519
          %531 = vmatprep.subr.mxu0 0.0
          %532 = vmatpush1.msra.mxu0 %v520
          %533 = vmatprep.subr.mxu0 0.0
          %534 = vmatpush1.msra.mxu0 0.0
          %535 = vmatprep.subr.mxu0 0.0
          %536 = vmatpush1.msra.mxu0 0.0
          %537 = vmatprep.subr.mxu0 0.0
          %538 = vmatpush1.msra.mxu0 0.0
          %539 = vmatprep.subr.mxu0 0.0
          %540 = vmatpush1.msra.mxu0 0.0
          %541 = vmatprep.subr.mxu0 0.0
          %542 = vmatpush1.msra.mxu0 0.0
          %543 = vmatprep.subr.mxu0 0.0
          %544 = vmatpush1.msra.mxu0 0.0
          %545 = vmatprep.subr.mxu0 0.0
          %546 = vmatpush1.msra.mxu0 0.0
          %547 = vmatprep.subr.mxu0 0.0
          %548 = vmatpush1.msra.mxu0 0.0
          %549 = vmatprep.subr.mxu0 0.0
          %550 = vmatpush1.msra.mxu0 0.0
          %551 = vmatprep.subr.mxu0 0.0
          %552 = vmatpush1.msra.mxu0 0.0
          %553 = vmatprep.subr.mxu0 0.0
          %554 = vmatpush1.msra.mxu0 0.0
          %555 = vmatprep.subr.mxu0 0.0
          %556 = vmatpush1.msra.mxu0 0.0
          %557 = vmatprep.subr.mxu0 0.0
          %558 = vmatpush1.msra.mxu0 0.0
          %559 = vmatprep.subr.mxu0 0.0
          %560 = vmatpush1.msra.mxu0 0.0
          %561 = vmatprep.subr.mxu0 0.0
          %562 = vmatpush1.msra.mxu0 0.0
          %563 = vmatprep.subr.mxu0 0.0
          %564 = vmatpush1.msra.mxu0 0.0
          %565 = vmatprep.subr.mxu0 0.0
          %566 = vmatpush1.msra.mxu0 0.0
          %567 = vmatprep.subr.mxu0 0.0
          %568 = vmatpush1.msra.mxu0 0.0
          %569 = vmatprep.subr.mxu0 0.0
          %570 = vmatpush1.msra.mxu0 0.0
          %571 = vmatprep.subr.mxu0 0.0
          %572 = vmatpush1.msra.mxu0 0.0
          %573 = vmatprep.subr.mxu0 0.0
          %574 = vmatpush1.msra.mxu0 0.0
          %575 = vmatprep.subr.mxu0 0.0
          %576 = vmatpush1.msra.mxu0 0.0
          %577 = vmatprep.subr.mxu0 0.0
          %578 = vmatpush1.msra.mxu0 0.0
          %579 = vmatprep.subr.mxu0 0.0
          %580 = vmatpush1.msra.mxu0 0.0
          %581 = vmatprep.subr.mxu0 0.0
          %582 = vmatpush1.msra.mxu0 0.0
          %583 = vmatprep.subr.mxu0 0.0
          %584 = vmatpush1.msra.mxu0 0.0
          %585 = vmatprep.subr.mxu0 0.0
          %586 = vmatpush1.msra.mxu0 0.0
          %587 = vmatprep.subr.mxu0 0.0
          %588 = vmatpush1.msra.mxu0 0.0
          %589 = vmatprep.mubr.f32.mxu0 0.0
          %590 = vmatmul.mubr.f32.gmra.mrb[0].mxu0 %v523
          %v591 = vpop.f32.mrb[0].mxu0
          %v592 = vadd.f32 %v521, %v591
          %v593 = vpop.f32.mrb[0].mxu0
          %594 = vdwg.mxu0
          %v595 = vmul.f32 %v592, 0.5
          %v596 = vmul.f32 %v592, 0.044715
          %v597 = vmul.f32 %v596, %v592
          %v598 = vmul.f32 %v597, %v592
          %v599 = vadd.f32 %v592, %v598
          %v600 = vmul.f32 %v599, 0.7978846
          %v601 = vtanh.pop %v600
          %v602 = vadd.f32 %v601, 1.0
          %v603 = vmul.f32 %v595, %v602
          %v604 = vld [vmem:[%s5] sm:$0xff]
          %v605 = vld [vmem:[%s5 + $0x8] sm:$0xff]
          %v606 = vld [vmem:[%s5 + $0x10] sm:$0xff]
          %v607 = vld [vmem:[%s5 + $0x18] sm:$0xff]
          %v608 = vld [vmem:[%s6] sm:$0x1]
          %v610 = vsel %vm477, %v603, 0
          %612 = vmatprep.subr.mxu0 0.0
          %613 = vmatpush1.msra.mxu0 %v604
          %614 = vmatprep.subr.mxu0 0.0
          %615 = vmatpush1.msra.mxu0 %v605
          %616 = vmatprep.subr.mxu0 0.0
          %617 = vmatpush1.msra.mxu0 %v606
          %618 = vmatprep.subr.mxu0 0.0
          %619 = vmatpush1.msra.mxu0 %v607
          %620 = vmatprep.subr.mxu0 0.0
          %621 = vmatpush1.msra.mxu0 0.0
          %622 = vmatprep.subr.mxu0 0.0
          %623 = vmatpush1.msra.mxu0 0.0
          %624 = vmatprep.subr.mxu0 0.0
          %625 = vmatpush1.msra.mxu0 0.0
          %626 = vmatprep.subr.mxu0 0.0
          %627 = vmatpush1.msra.mxu0 0.0
          %628 = vmatprep.subr.mxu0 0.0
          %629 = vmatpush1.msra.mxu0 0.0
          %630 = vmatprep.subr.mxu0 0.0
          %631 = vmatpush1.msra.mxu0 0.0
          %632 = vmatprep.subr.mxu0 0.0
          %633 = vmatpush1.msra.mxu0 0.0
          %634 = vmatprep.subr.mxu0 0.0
          %635 = vmatpush1.msra.mxu0 0.0
          %636 = vmatprep.subr.mxu0 0.0
          %637 = vmatpush1.msra.mxu0 0.0
          %638 = vmatprep.subr.mxu0 0.0
          %639 = vmatpush1.msra.mxu0 0.0
          %640 = vmatprep.subr.mxu0 0.0
          %641 = vmatpush1.msra.mxu0 0.0
          %642 = vmatprep.subr.mxu0 0.0
          %643 = vmatpush1.msra.mxu0 0.0
          %644 = vmatprep.subr.mxu0 0.0
          %645 = vmatpush1.msra.mxu0 0.0
          %646 = vmatprep.subr.mxu0 0.0
          %647 = vmatpush1.msra.mxu0 0.0
          %648 = vmatprep.subr.mxu0 0.0
          %649 = vmatpush1.msra.mxu0 0.0
          %650 = vmatprep.subr.mxu0 0.0
          %651 = vmatpush1.msra.mxu0 0.0
          %652 = vmatprep.subr.mxu0 0.0
          %653 = vmatpush1.msra.mxu0 0.0
          %654 = vmatprep.subr.mxu0 0.0
          %655 = vmatpush1.msra.mxu0 0.0
          %656 = vmatprep.subr.mxu0 0.0
          %657 = vmatpush1.msra.mxu0 0.0
          %658 = vmatprep.subr.mxu0 0.0
          %659 = vmatpush1.msra.mxu0 0.0
          %660 = vmatprep.subr.mxu0 0.0
          %661 = vmatpush1.msra.mxu0 0.0
          %662 = vmatprep.subr.mxu0 0.0
          %663 = vmatpush1.msra.mxu0 0.0
          %664 = vmatprep.subr.mxu0 0.0
          %665 = vmatpush1.msra.mxu0 0.0
          %666 = vmatprep.subr.mxu0 0.0
          %667 = vmatpush1.msra.mxu0 0.0
          %668 = vmatprep.subr.mxu0 0.0
          %669 = vmatpush1.msra.mxu0 0.0
          %670 = vmatprep.subr.mxu0 0.0
          %671 = vmatpush1.msra.mxu0 0.0
          %672 = vmatprep.subr.mxu0 0.0
          %673 = vmatpush1.msra.mxu0 0.0
          %674 = vmatprep.subr.mxu0 0.0
          %675 = vmatpush1.msra.mxu0 0.0
          %676 = vmatprep.mubr.f32.mxu0 0.0
          %677 = vmatmul.mubr.f32.gmra.mrb[0].mxu0 %v610
          %v678 = vpop.f32.mrb[0].mxu0
          %v679 = vadd.f32 %v608, %v678
          %v680 = vpop.f32.mrb[0].mxu0
          %681 = vdwg.mxu0
          %v682 = vld [vmem:[%s10] sm:$0xff]
          %683 = vxpose.xlu0.b32.start [1/16] %v507, 128
          %684 = vxpose.xlu0.b32.cont [2/16] 0.0, 128
          %685 = vxpose.xlu0.b32.cont [3/16] 0.0, 128
          %686 = vxpose.xlu0.b32.cont [4/16] 0.0, 128
          %687 = vxpose.xlu0.b32.cont [5/16] 0.0, 128
          %688 = vxpose.xlu0.b32.cont [6/16] 0.0, 128
          %689 = vxpose.xlu0.b32.cont [7/16] 0.0, 128
          %690 = vxpose.xlu0.b32.cont [8/16] 0.0, 128
          %691 = vxpose.xlu0.b32.cont [9/16] 0.0, 128
          %692 = vxpose.xlu0.b32.cont [10/16] 0.0, 128
          %693 = vxpose.xlu0.b32.cont [11/16] 0.0, 128
          %694 = vxpose.xlu0.b32.cont [12/16] 0.0, 128
          %695 = vxpose.xlu0.b32.cont [13/16] 0.0, 128
          %696 = vxpose.xlu0.b32.cont [14/16] 0.0, 128
          %697 = vxpose.xlu0.b32.cont [15/16] 0.0, 128
          %698 = vxpose.xlu0.b32.end [16/16] 0.0, 128
          %v699 = vpop.trf.xlu0
          %v700 = vpop.trf.xlu0
          %v701 = vpop.trf.xlu0
          %v702 = vpop.trf.xlu0
          %v703 = vpop.trf.xlu0
          %v704 = vpop.trf.xlu0
          %v705 = vpop.trf.xlu0
          %v706 = vpop.trf.xlu0
          %v707 = vpop.trf.xlu0
          %v708 = vpop.trf.xlu0
          %v709 = vpop.trf.xlu0
          %v710 = vpop.trf.xlu0
          %v711 = vpop.trf.xlu0
          %v712 = vpop.trf.xlu0
          %v713 = vpop.trf.xlu0
          %v714 = vpop.trf.xlu0
          %vm715 = vcmask 64512
          %v717 = vsel %vm715, %v699, 0
          %v720 = vsel %vm715, %v700, 0
          %v723 = vsel %vm715, %v701, 0
          %v726 = vsel %vm715, %v702, 0
          %728 = vmatprep.subr.mxu0 0.0
          %729 = vmatpush1.msra.mxu0 %v682
          %730 = vmatprep.subr.mxu0 0.0
          %731 = vmatpush1.msra.mxu0 0.0
          %732 = vmatprep.subr.mxu0 0.0
          %733 = vmatpush1.msra.mxu0 0.0
          %734 = vmatprep.subr.mxu0 0.0
          %735 = vmatpush1.msra.mxu0 0.0
          %736 = vmatprep.subr.mxu0 0.0
          %737 = vmatpush1.msra.mxu0 0.0
          %738 = vmatprep.subr.mxu0 0.0
          %739 = vmatpush1.msra.mxu0 0.0
          %740 = vmatprep.subr.mxu0 0.0
          %741 = vmatpush1.msra.mxu0 0.0
          %742 = vmatprep.subr.mxu0 0.0
          %743 = vmatpush1.msra.mxu0 0.0
          %744 = vmatprep.subr.mxu0 0.0
          %745 = vmatpush1.msra.mxu0 0.0
          %746 = vmatprep.subr.mxu0 0.0
          %747 = vmatpush1.msra.mxu0 0.0
          %748 = vmatprep.subr.mxu0 0.0
          %749 = vmatpush1.msra.mxu0 0.0
          %750 = vmatprep.subr.mxu0 0.0
          %751 = vmatpush1.msra.mxu0 0.0
          %752 = vmatprep.subr.mxu0 0.0
          %753 = vmatpush1.msra.mxu0 0.0
          %754 = vmatprep.subr.mxu0 0.0
          %755 = vmatpush1.msra.mxu0 0.0
          %756 = vmatprep.subr.mxu0 0.0
          %757 = vmatpush1.msra.mxu0 0.0
          %758 = vmatprep.subr.mxu0 0.0
          %759 = vmatpush1.msra.mxu0 0.0
          %760 = vmatprep.subr.mxu0 0.0
          %761 = vmatpush1.msra.mxu0 0.0
          %762 = vmatprep.subr.mxu0 0.0
          %763 = vmatpush1.msra.mxu0 0.0
          %764 = vmatprep.subr.mxu0 0.0
          %765 = vmatpush1.msra.mxu0 0.0
          %766 = vmatprep.subr.mxu0 0.0
          %767 = vmatpush1.msra.mxu0 0.0
          %768 = vmatprep.subr.mxu0 0.0
          %769 = vmatpush1.msra.mxu0 0.0
          %770 = vmatprep.subr.mxu0 0.0
          %771 = vmatpush1.msra.mxu0 0.0
          %772 = vmatprep.subr.mxu0 0.0
          %773 = vmatpush1.msra.mxu0 0.0
          %774 = vmatprep.subr.mxu0 0.0
          %775 = vmatpush1.msra.mxu0 0.0
          %776 = vmatprep.subr.mxu0 0.0
          %777 = vmatpush1.msra.mxu0 0.0
          %778 = vmatprep.subr.mxu0 0.0
          %779 = vmatpush1.msra.mxu0 0.0
          %780 = vmatprep.subr.mxu0 0.0
          %781 = vmatpush1.msra.mxu0 0.0
          %782 = vmatprep.subr.mxu0 0.0
          %783 = vmatpush1.msra.mxu0 0.0
          %784 = vmatprep.subr.mxu0 0.0
          %785 = vmatpush1.msra.mxu0 0.0
          %786 = vmatprep.subr.mxu0 0.0
          %787 = vmatpush1.msra.mxu0 0.0
          %788 = vmatprep.subr.mxu0 0.0
          %789 = vmatpush1.msra.mxu0 0.0
          %790 = vmatprep.subr.mxu0 0.0
          %791 = vmatpush1.msra.mxu0 0.0
          %792 = vmatprep.mubr.f32.mxu0 0.0
          %793 = vmatmul.mubr.f32.gmra.mrb[0].mxu0 %v717
          %v794 = vpop.f32.mrb[0].mxu0
          %v795 = vadd.f32 0.0, %v794
          %v796 = vpop.f32.mrb[0].mxu0
          %797 = vmatprep.mubr.f32.mxu0 0.0
          %798 = vmatmul.mubr.f32.gmra.mrb[0].mxu0 %v720
          %v799 = vpop.f32.mrb[0].mxu0
          %v800 = vadd.f32 0.0, %v799
          %v801 = vpop.f32.mrb[0].mxu0
          %802 = vmatprep.mubr.f32.mxu0 0.0
          %803 = vmatmul.mubr.f32.gmra.mrb[0].mxu0 %v723
          %v804 = vpop.f32.mrb[0].mxu0
          %v805 = vadd.f32 0.0, %v804
          %v806 = vpop.f32.mrb[0].mxu0
          %807 = vmatprep.mubr.f32.mxu0 0.0
          %808 = vmatmul.mubr.f32.gmra.mrb[0].mxu0 %v726
          %v809 = vpop.f32.mrb[0].mxu0
          %v810 = vadd.f32 0.0, %v809
          %v811 = vpop.f32.mrb[0].mxu0
          %812 = vdwg.mxu0
          %v813 = vld [vmem:[%s9] sm:$0xff]
          %v814 = vld [vmem:[%s9 + $0x8] sm:$0xff]
          %v815 = vld [vmem:[%s9 + $0x10] sm:$0xff]
          %v816 = vld [vmem:[%s9 + $0x18] sm:$0xff]
          %818 = vset.pattern.permute.xlu0 0
          %819 = vperm.xlu0 %818, %v813
          %v820 = vpop.permute.xlu0 %819
          %823 = vset.pattern.permute.xlu0 0
          %824 = vperm.xlu0 %823, %v814
          %v825 = vpop.permute.xlu0 %824
          %828 = vset.pattern.permute.xlu0 0
          %829 = vperm.xlu0 %828, %v815
          %v830 = vpop.permute.xlu0 %829
          %833 = vset.pattern.permute.xlu0 0
          %834 = vperm.xlu0 %833, %v816
          %v835 = vpop.permute.xlu0 %834
          %v837 = vlaneseq
          %v838 = vshrl.u32 %v837, 7
          %v839 = vsub.s32 0, %v838
          %v840 = vrot.slane %v679, %v839
          %v841 = vmul.f32 %v820, %v840
          %v842 = vmul.f32 %v825, %v840
          %v843 = vmul.f32 %v830, %v840
          %v844 = vmul.f32 %v835, %v840
          %v845 = vadd.f32 %v841, 0.0
          %v846 = vadd.f32 %v842, 0.0
          %v847 = vadd.f32 %v843, 0.0
          %v848 = vadd.f32 %v844, 0.0
          %849 = vset.pattern.permute.xlu0 1
          %850 = vperm.xlu0 %849, %v813
          %v851 = vpop.permute.xlu0 %850
          %853 = vset.pattern.permute.xlu0 1
          %854 = vperm.xlu0 %853, %v814
          %v855 = vpop.permute.xlu0 %854
          %857 = vset.pattern.permute.xlu0 1
          %858 = vperm.xlu0 %857, %v815
          %v859 = vpop.permute.xlu0 %858
          %861 = vset.pattern.permute.xlu0 1
          %862 = vperm.xlu0 %861, %v816
          %v863 = vpop.permute.xlu0 %862
          %v865 = vmul.f32 %v851, %v840
          %v866 = vmul.f32 %v855, %v840
          %v867 = vmul.f32 %v859, %v840
          %v868 = vmul.f32 %v863, %v840
          %873 = vrot.lane.b32.xlu0 %v865, 123
          %v874 = vpop.permute.xlu0 %873
          %875 = vrot.lane.b32.xlu0 %v866, 123
          %v876 = vpop.permute.xlu0 %875
          %877 = vrot.lane.b32.xlu0 %v867, 123
          %v878 = vpop.permute.xlu0 %877
          %879 = vrot.lane.b32.xlu0 %v868, 123
          %v880 = vpop.permute.xlu0 %879
          %v885 = vadd.f32 %v845, %v874
          %v886 = vadd.f32 %v846, %v876
          %v887 = vadd.f32 %v847, %v878
          %v888 = vadd.f32 %v848, %v880
          %889 = vset.pattern.permute.xlu0 2
          %890 = vperm.xlu0 %889, %v813
          %v891 = vpop.permute.xlu0 %890
          %893 = vset.pattern.permute.xlu0 2
          %894 = vperm.xlu0 %893, %v814
          %v895 = vpop.permute.xlu0 %894
          %897 = vset.pattern.permute.xlu0 2
          %898 = vperm.xlu0 %897, %v815
          %v899 = vpop.permute.xlu0 %898
          %901 = vset.pattern.permute.xlu0 2
          %902 = vperm.xlu0 %901, %v816
          %v903 = vpop.permute.xlu0 %902
          %v905 = vmul.f32 %v891, %v840
          %v906 = vmul.f32 %v895, %v840
          %v907 = vmul.f32 %v899, %v840
          %v908 = vmul.f32 %v903, %v840
          %913 = vrot.lane.b32.xlu0 %v905, 118
          %v914 = vpop.permute.xlu0 %913
          %915 = vrot.lane.b32.xlu0 %v906, 118
          %v916 = vpop.permute.xlu0 %915
          %917 = vrot.lane.b32.xlu0 %v907, 118
          %v918 = vpop.permute.xlu0 %917
          %919 = vrot.lane.b32.xlu0 %v908, 118
          %v920 = vpop.permute.xlu0 %919
          %v925 = vadd.f32 %v885, %v914
          %v926 = vadd.f32 %v886, %v916
          %v927 = vadd.f32 %v887, %v918
          %v928 = vadd.f32 %v888, %v920
          %929 = vset.pattern.permute.xlu0 3
          %930 = vperm.xlu0 %929, %v813
          %v931 = vpop.permute.xlu0 %930
          %933 = vset.pattern.permute.xlu0 3
          %934 = vperm.xlu0 %933, %v814
          %v935 = vpop.permute.xlu0 %934
          %937 = vset.pattern.permute.xlu0 3
          %938 = vperm.xlu0 %937, %v815
          %v939 = vpop.permute.xlu0 %938
          %941 = vset.pattern.permute.xlu0 3
          %942 = vperm.xlu0 %941, %v816
          %v943 = vpop.permute.xlu0 %942
          %v945 = vmul.f32 %v931, %v840
          %v946 = vmul.f32 %v935, %v840
          %v947 = vmul.f32 %v939, %v840
          %v948 = vmul.f32 %v943, %v840
          %953 = vrot.lane.b32.xlu0 %v945, 113
          %v954 = vpop.permute.xlu0 %953
          %955 = vrot.lane.b32.xlu0 %v946, 113
          %v956 = vpop.permute.xlu0 %955
          %957 = vrot.lane.b32.xlu0 %v947, 113
          %v958 = vpop.permute.xlu0 %957
          %959 = vrot.lane.b32.xlu0 %v948, 113
          %v960 = vpop.permute.xlu0 %959
          %v965 = vadd.f32 %v925, %v954
          %v966 = vadd.f32 %v926, %v956
          %v967 = vadd.f32 %v927, %v958
          %v968 = vadd.f32 %v928, %v960
          %v969 = vld [vmem:[%s7] sm:$0xff]
          %v970 = vld [vmem:[%s7 + $0x8] sm:$0xff]
          %v971 = vld [vmem:[%s7 + $0x10] sm:$0xff]
          %v972 = vld [vmem:[%s7 + $0x18] sm:$0xff]
          %v973 = vadd.f32 %v965, 1.0
          %v974 = vadd.f32 %v966, 1.0
          %v975 = vadd.f32 %v967, 1.0
          %v976 = vadd.f32 %v968, 1.0
          %v977 = vmul.f32 %v969, %v973
          %v978 = vmul.f32 %v970, %v974
          %v979 = vmul.f32 %v971, %v975
          %v980 = vmul.f32 %v972, %v976
          %v981 = vld [vmem:[%s8] sm:$0xff]
          %v982 = vld [vmem:[%s8 + $0x8] sm:$0xff]
          %v983 = vld [vmem:[%s8 + $0x10] sm:$0xff]
          %v984 = vld [vmem:[%s8 + $0x18] sm:$0xff]
          %989 = vrot.lane.b32.xlu0 %v965, 108
          %v990 = vpop.permute.xlu0 %989
          %991 = vrot.lane.b32.xlu0 %v966, 108
          %v992 = vpop.permute.xlu0 %991
          %993 = vrot.lane.b32.xlu0 %v967, 108
          %v994 = vpop.permute.xlu0 %993
          %995 = vrot.lane.b32.xlu0 %v968, 108
          %v996 = vpop.permute.xlu0 %995
          %v1001 = vadd.f32 %v981, %v990
          %v1002 = vadd.f32 %v982, %v992
          %v1003 = vadd.f32 %v983, %v994
          %v1004 = vadd.f32 %v984, %v996
          %v1005 = vmul.f32 %v795, %v977
          %v1006 = vmul.f32 %v800, %v978
          %v1007 = vmul.f32 %v805, %v979
          %v1008 = vmul.f32 %v810, %v980
          %v1009 = vadd.f32 %v1005, %v1001
          %v1010 = vadd.f32 %v1006, %v1002
          %v1011 = vadd.f32 %v1007, %v1003
          %v1012 = vadd.f32 %v1008, %v1004
          %1017 = vrot.lane.b32.xlu0 %v977, 5
          %v1018 = vpop.permute.xlu0 %1017
          %1019 = vrot.lane.b32.xlu0 %v978, 5
          %v1020 = vpop.permute.xlu0 %1019
          %1021 = vrot.lane.b32.xlu0 %v979, 5
          %v1022 = vpop.permute.xlu0 %1021
          %1023 = vrot.lane.b32.xlu0 %v980, 5
          %v1024 = vpop.permute.xlu0 %1023
          %v1029 = vmul.f32 %v795, %v1018
          %v1030 = vmul.f32 %v800, %v1020
          %v1031 = vmul.f32 %v805, %v1022
          %v1032 = vmul.f32 %v810, %v1024
          %v1033 = vmul.f32 %v1009, %v1009
          %v1034 = vmul.f32 %v1010, %v1010
          %v1035 = vmul.f32 %v1011, %v1011
          %v1036 = vmul.f32 %v1012, %v1012
          %v1037 = vmul.f32 %v1029, %v1029
          %v1038 = vmul.f32 %v1030, %v1030
          %v1039 = vmul.f32 %v1031, %v1031
          %v1040 = vmul.f32 %v1032, %v1032
          %1045 = vrot.lane.b32.xlu0 %v1037, 123
          %v1046 = vpop.permute.xlu0 %1045
          %1047 = vrot.lane.b32.xlu0 %v1038, 123
          %v1048 = vpop.permute.xlu0 %1047
          %1049 = vrot.lane.b32.xlu0 %v1039, 123
          %v1050 = vpop.permute.xlu0 %1049
          %1051 = vrot.lane.b32.xlu0 %v1040, 123
          %v1052 = vpop.permute.xlu0 %1051
          %v1057 = vadd.f32 %v1033, %v1046
          %v1058 = vadd.f32 %v1034, %v1048
          %v1059 = vadd.f32 %v1035, %v1050
          %v1060 = vadd.f32 %v1036, %v1052
          %v1061 = vrsqrt.pop %v1057
          %v1062 = vmul.f32 %v1057, %v1061
          %vm1063 = vcmp.eq.f32.partialorder %v1057, inf
          %v1064 = vsel %vm1063, %v1057, %v1062
          %vm1065 = vcmp.eq.f32.partialorder %v1057, 0.0
          %v1066 = vand.u32 %v1057, 2147483648
          %v1067 = vsel %vm1065, %v1066, %v1064
          %v1068 = vrsqrt.pop %v1058
          %v1069 = vmul.f32 %v1058, %v1068
          %vm1070 = vcmp.eq.f32.partialorder %v1058, inf
          %v1071 = vsel %vm1070, %v1058, %v1069
          %vm1072 = vcmp.eq.f32.partialorder %v1058, 0.0
          %v1073 = vand.u32 %v1058, 2147483648
          %v1074 = vsel %vm1072, %v1073, %v1071
          %v1075 = vrsqrt.pop %v1059
          %v1076 = vmul.f32 %v1059, %v1075
          %vm1077 = vcmp.eq.f32.partialorder %v1059, inf
          %v1078 = vsel %vm1077, %v1059, %v1076
          %vm1079 = vcmp.eq.f32.partialorder %v1059, 0.0
          %v1080 = vand.u32 %v1059, 2147483648
          %v1081 = vsel %vm1079, %v1080, %v1078
          %v1082 = vrsqrt.pop %v1060
          %v1083 = vmul.f32 %v1060, %v1082
          %vm1084 = vcmp.eq.f32.partialorder %v1060, inf
          %v1085 = vsel %vm1084, %v1060, %v1083
          %vm1086 = vcmp.eq.f32.partialorder %v1060, 0.0
          %v1087 = vand.u32 %v1060, 2147483648
          %v1088 = vsel %vm1086, %v1087, %v1085
          %v1089 = vmul.f32 %v1067, 0.5
          %v1090 = vmul.f32 %v1074, 0.5
          %v1091 = vmul.f32 %v1081, 0.5
          %v1092 = vmul.f32 %v1088, 0.5
          %v1093 = vmul.f32 %v1067, 0.044715
          %v1094 = vmul.f32 %v1074, 0.044715
          %v1095 = vmul.f32 %v1081, 0.044715
          %v1096 = vmul.f32 %v1088, 0.044715
          %v1097 = vmul.f32 %v1093, %v1067
          %v1098 = vmul.f32 %v1094, %v1074
          %v1099 = vmul.f32 %v1095, %v1081
          %v1100 = vmul.f32 %v1096, %v1088
          %v1101 = vmul.f32 %v1097, %v1067
          %v1102 = vmul.f32 %v1098, %v1074
          %v1103 = vmul.f32 %v1099, %v1081
          %v1104 = vmul.f32 %v1100, %v1088
          %v1105 = vadd.f32 %v1067, %v1101
          %v1106 = vadd.f32 %v1074, %v1102
          %v1107 = vadd.f32 %v1081, %v1103
          %v1108 = vadd.f32 %v1088, %v1104
          %v1109 = vmul.f32 %v1105, 0.7978846
          %v1110 = vmul.f32 %v1106, 0.7978846
          %v1111 = vmul.f32 %v1107, 0.7978846
          %v1112 = vmul.f32 %v1108, 0.7978846
          %v1113 = vtanh.pop %v1109
          %v1114 = vtanh.pop %v1110
          %v1115 = vtanh.pop %v1111
          %v1116 = vtanh.pop %v1112
          %v1117 = vadd.f32 %v1113, 1.0
          %v1118 = vadd.f32 %v1114, 1.0
          %v1119 = vadd.f32 %v1115, 1.0
          %v1120 = vadd.f32 %v1116, 1.0
          %v1121 = vmul.f32 %v1089, %v1117
          %v1122 = vmul.f32 %v1090, %v1118
          %v1123 = vmul.f32 %v1091, %v1119
          %v1124 = vmul.f32 %v1092, %v1120
          %v1125 = vadd.f32 %v1067, 1e-06
          %v1126 = vadd.f32 %v1074, 1e-06
          %v1127 = vadd.f32 %v1081, 1e-06
          %v1128 = vadd.f32 %v1088, 1e-06
          %v1129 = vrcp.pop %v1125
          %v1130 = vrcp.pop %v1126
          %v1131 = vrcp.pop %v1127
          %v1132 = vrcp.pop %v1128
          %v1133 = vmul.f32 %v1121, %v1129
          %v1134 = vmul.f32 %v1122, %v1130
          %v1135 = vmul.f32 %v1123, %v1131
          %v1136 = vmul.f32 %v1124, %v1132
          %v1137 = vmul.f32 %v1009, %v1133
          %v1138 = vmul.f32 %v1010, %v1134
          %v1139 = vmul.f32 %v1011, %v1135
          %v1140 = vmul.f32 %v1012, %v1136
          %1145 = vrot.lane.b32.xlu0 %v1133, 5
          %v1146 = vpop.permute.xlu0 %1145
          %1147 = vrot.lane.b32.xlu0 %v1134, 5
          %v1148 = vpop.permute.xlu0 %1147
          %1149 = vrot.lane.b32.xlu0 %v1135, 5
          %v1150 = vpop.permute.xlu0 %1149
          %1151 = vrot.lane.b32.xlu0 %v1136, 5
          %v1152 = vpop.permute.xlu0 %1151
          %v1157 = vmul.f32 %v1029, %v1146
          %v1158 = vmul.f32 %v1030, %v1148
          %v1159 = vmul.f32 %v1031, %v1150
          %v1160 = vmul.f32 %v1032, %v1152
          %vm1161 = vcmask 39936
          %v1162 = vsel %vm1161, %v1137, %v1157
          %v1163 = vsel %vm1161, %v1138, %v1158
          %v1164 = vsel %vm1161, %v1139, %v1159
          %v1165 = vsel %vm1161, %v1140, %v1160
          %v1166 = vld [vmem:[%s11] sm:$0xff]
          %vm1167 = vcmask 80896
          %v1169 = vsel %vm1167, %v1166, 0
          %v1172 = vsel %vm1167, %v1162, 0
          %v1175 = vsel %vm1167, %v1163, 0
          %v1178 = vsel %vm1167, %v1164, 0
          %v1181 = vsel %vm1167, %v1165, 0
          %1183 = vmatprep.subr.mxu0 0.0
          %1184 = vmatpush1.xpose.msra.mxu0 %v1172
          %1185 = vmatprep.subr.mxu0 0.0
          %1186 = vmatpush1.xpose.msra.mxu0 %v1175
          %1187 = vmatprep.subr.mxu0 0.0
          %1188 = vmatpush1.xpose.msra.mxu0 %v1178
          %1189 = vmatprep.subr.mxu0 0.0
          %1190 = vmatpush1.xpose.msra.mxu0 %v1181
          %1191 = vmatprep.subr.mxu0 0.0
          %1192 = vmatpush1.xpose.msra.mxu0 0.0
          %1193 = vmatprep.subr.mxu0 0.0
          %1194 = vmatpush1.xpose.msra.mxu0 0.0
          %1195 = vmatprep.subr.mxu0 0.0
          %1196 = vmatpush1.xpose.msra.mxu0 0.0
          %1197 = vmatprep.subr.mxu0 0.0
          %1198 = vmatpush1.xpose.msra.mxu0 0.0
          %1199 = vmatprep.subr.mxu0 0.0
          %1200 = vmatpush1.xpose.msra.mxu0 0.0
          %1201 = vmatprep.subr.mxu0 0.0
          %1202 = vmatpush1.xpose.msra.mxu0 0.0
          %1203 = vmatprep.subr.mxu0 0.0
          %1204 = vmatpush1.xpose.msra.mxu0 0.0
          %1205 = vmatprep.subr.mxu0 0.0
          %1206 = vmatpush1.xpose.msra.mxu0 0.0
          %1207 = vmatprep.subr.mxu0 0.0
          %1208 = vmatpush1.xpose.msra.mxu0 0.0
          %1209 = vmatprep.subr.mxu0 0.0
          %1210 = vmatpush1.xpose.msra.mxu0 0.0
          %1211 = vmatprep.subr.mxu0 0.0
          %1212 = vmatpush1.xpose.msra.mxu0 0.0
          %1213 = vmatprep.subr.mxu0 0.0
          %1214 = vmatpush1.xpose.msra.mxu0 0.0
          %1215 = vmatprep.subr.mxu0 0.0
          %1216 = vmatpush1.xpose.msra.mxu0 0.0
          %1217 = vmatprep.subr.mxu0 0.0
          %1218 = vmatpush1.xpose.msra.mxu0 0.0
          %1219 = vmatprep.subr.mxu0 0.0
          %1220 = vmatpush1.xpose.msra.mxu0 0.0
          %1221 = vmatprep.subr.mxu0 0.0
          %1222 = vmatpush1.xpose.msra.mxu0 0.0
          %1223 = vmatprep.subr.mxu0 0.0
          %1224 = vmatpush1.xpose.msra.mxu0 0.0
          %1225 = vmatprep.subr.mxu0 0.0
          %1226 = vmatpush1.xpose.msra.mxu0 0.0
          %1227 = vmatprep.subr.mxu0 0.0
          %1228 = vmatpush1.xpose.msra.mxu0 0.0
          %1229 = vmatprep.subr.mxu0 0.0
          %1230 = vmatpush1.xpose.msra.mxu0 0.0
          %1231 = vmatprep.subr.mxu0 0.0
          %1232 = vmatpush1.xpose.msra.mxu0 0.0
          %1233 = vmatprep.subr.mxu0 0.0
          %1234 = vmatpush1.xpose.msra.mxu0 0.0
          %1235 = vmatprep.subr.mxu0 0.0
          %1236 = vmatpush1.xpose.msra.mxu0 0.0
          %1237 = vmatprep.subr.mxu0 0.0
          %1238 = vmatpush1.xpose.msra.mxu0 0.0
          %1239 = vmatprep.subr.mxu0 0.0
          %1240 = vmatpush1.xpose.msra.mxu0 0.0
          %1241 = vmatprep.subr.mxu0 0.0
          %1242 = vmatpush1.xpose.msra.mxu0 0.0
          %1243 = vmatprep.subr.mxu0 0.0
          %1244 = vmatpush1.xpose.msra.mxu0 0.0
          %1245 = vmatprep.subr.mxu0 0.0
          %1246 = vmatpush1.xpose.msra.mxu0 0.0
          %1247 = vmatprep.mubr.f32.mxu0 0.0
          %1248 = vmatmul.mubr.f32.gmra.mrb[0].mxu0 %v1169
          %v1249 = vpop.f32.mrb[0].mxu0
          %v1250 = vadd.f32 0.0, %v1249
          %v1251 = vpop.f32.mrb[0].mxu0
          %1252 = vdwg.mxu0
          %v1253 = vrot.slane %v507, 7
          %v1254 = vrot.slane %v507, 1
          %v1255 = vsel %vm467, %v507, %v1253
          %v1256 = vsel %vm467, %v1254, %v507
          %v1257 = vadd.f32 %v1255, %v1256
          %v1258 = vmul.f32 %v1257, 0.5
          %v1259 = vsub.f32 %v1255, %v1256
          %v1260 = vmul.f32 %v1259, 0.5
          %v1261 = vmul.f32 %v1258, 0.5
          %v1262 = vmul.f32 %v1258, 0.044715
          %v1263 = vmul.f32 %v1262, %v1258
          %v1264 = vmul.f32 %v1263, %v1258
          %v1265 = vadd.f32 %v1258, %v1264
          %v1266 = vmul.f32 %v1265, 0.7978846
          %v1267 = vtanh.pop %v1266
          %v1268 = vadd.f32 %v1267, 1.0
          %v1269 = vmul.f32 %v1261, %v1268
          %v1270 = vmul.f32 %v1260, 0.5
          %v1271 = vmul.f32 %v1260, 0.044715
          %v1272 = vmul.f32 %v1271, %v1260
          %v1273 = vmul.f32 %v1272, %v1260
          %v1274 = vadd.f32 %v1260, %v1273
          %v1275 = vmul.f32 %v1274, 0.7978846
          %v1276 = vtanh.pop %v1275
          %v1277 = vadd.f32 %v1276, 1.0
          %v1278 = vmul.f32 %v1270, %v1277
          %v1279 = vsub.f32 0.0, %v1278
          %v1280 = vsel %vm467, %v1278, %v1279
          %v1281 = vadd.f32 %v1269, %v1280
          %v1283 = vlaneseq
          %v1284 = vshrl.u32 %v1283, 7
          %v1285 = vsub.s32 0, %v1284
          %v1286 = vrot.slane %v463, %v1285
          %1287 = vset.pattern.permute.xlu0 0
          %1288 = vperm.xlu0 %1287, %v1286
          %v1289 = vpop.permute.xlu0 %1288
          %v1291 = vmul.f32 %v1289, %v1281
          %v1292 = vsub.f32 1.0, %v463
          %v1294 = vlaneseq
          %v1295 = vshrl.u32 %v1294, 7
          %v1296 = vsub.s32 0, %v1295
          %v1297 = vrot.slane %v1292, %v1296
          %1298 = vset.pattern.permute.xlu0 0
          %1299 = vperm.xlu0 %1298, %v1297
          %v1300 = vpop.permute.xlu0 %1299
          %v1302 = vmul.f32 %v1300, %v1250
          %v1303 = vadd.f32 %v1291, %v1302
          %v1304 = vadd.f32 %v476, %v1303
          %s1305 = scalar_lea.vmem %s449, %s474 [#allocation6]
          %1306 = vst.msk [vmem:[%s1305] sm:$0xff] %vm477, %v1304
        $region81: #{tpu_custom_call.1} parent=71 // loop_footer
          %s473 = sadd.s32 1, %s469
        $region82: #{tpu_custom_call.1} parent=71 // loop_footer_branch
          %468 = sbr.rel target = $region78
        $region83: #{tpu_custom_call.1} parent=71 // loop_exit
          _
        %s1307 = sand.u32 %s316, 1
        %s1308 = scalar_lea.sflag [#allocation5], %s1307
        %s1309 = sand.u32 %s316, 1
        %s1310 = smul.addr %s1309, 16
        %s1311 = scalar_lea.vmem [#allocation6], %s1310
        // Predicated region
        $region84: #{tpu_custom_call.1} parent=71 // pred_check
          %p1312 = pneg %p326
        $region85: #{tpu_custom_call.1} parent=71 // pred_check_branch
          %1314 = sbr.rel (%p1312) target = $region87
        $region86: #{tpu_custom_call.1} parent=71 // pred_region
          %s1315 = smul.u32 2, %s30
          %s1317 = ssub.s32 256, 256
          %1318 = vsyncadd %s1308, %s1317
          %s1319 = smul.addr %s1315, 128
          %s1320 = scalar_lea.hbm %s13, %s1319
          %s1321 = sshll.u32 %s1311, 4
          %s1322 = int_to_ptr.vmem [resolvable:$true] %s1321
          %1327 = dma.vmem_to_hbm [thread:$0]  %s1322, 256, %s1320, %s1308, 128, 128, 8
        $region87: #{tpu_custom_call.1} parent=71 // pred_fallthru
          _
      $region72: #{tpu_custom_call.1} parent=5 // pred_fallthru
        _
      %p1328 = scmp.le.s32.totalorder 2, %s25
      // Predicated region
      $region88: #{tpu_custom_call.1} parent=5 // pred_check
        %p1329 = pneg %p1328
      $region89: #{tpu_custom_call.1} parent=5 // pred_check_branch
        %1331 = sbr.rel (%p1329) target = $region91
      $region90: #{tpu_custom_call.1} parent=5 // pred_region
        %s1332 = ssub.s32 %s25, 2
        // Predicated region
        $region92: #{tpu_custom_call.1} parent=90 // pred_check
          %p1333 = pneg %p332
        $region93: #{tpu_custom_call.1} parent=90 // pred_check_branch
          %1335 = sbr.rel (%p1333) target = $region95
        $region94: #{tpu_custom_call.1} parent=90 // pred_region
          %s1336 = sand.u32 %s317, 1
          %s1337 = scalar_lea.sflag [#allocation5], %s1336
          %s1338 = sand.u32 %s317, 1
          %s1339 = smul.addr %s1338, 16
          %s1340 = scalar_lea.vmem [#allocation6], %s1339
          %1341 = dma.done %s1337, 256
        $region95: #{tpu_custom_call.1} parent=90 // pred_fallthru
          _
      $region91: #{tpu_custom_call.1} parent=5 // pred_fallthru
        _
    $region6: #{tpu_custom_call.1} parent=1 // loop_footer
      %s29 = sadd.s32 1, %s25
    $region7: #{tpu_custom_call.1} parent=1 // loop_footer_branch
      %24 = sbr.rel target = $region3
    $region8: #{tpu_custom_call.1} parent=1 // loop_exit
      _
    %1342 = vsyncpa [#allocation4], 1
    %s1343 = scalar_lea.sflag [#allocation4], 1
    %1344 = vsyncpa %s1343, 1
    %1345 = vsyncpa [#allocation5], 1
    %s1346 = scalar_lea.sflag [#allocation5], 1
    %1347 = vsyncpa %s1346, 1

</llo_original>
